<compile_context>
chip_gen: v7x
topology: tpu7x:2x2x1
jax: 0.10.0
libtpu: 0.0.40
codegen_flags: <defaults>
</compile_context>

<pallas_src>
import math

import jax
import jax.numpy as jnp
from jax.experimental import pallas as pl
from jax.experimental.pallas import tpu as pltpu


def conv2d_pallas(x, w, b, stride, compute_dtype=jnp.bfloat16):
    """VALID conv2d, NCHW input, OIHW weight: in-kernel implicit im2col on the MXU.

    The input is pre-split into stride*stride phases (space-to-batch) so that
    every (kh, kw) tap of the kernel corresponds to a *contiguous* run of rows
    in a flattened (H*W) layout; the conv then becomes K*K accumulated
    (M_ext, Cin) x (Cin, Cout) matmuls, reading x from HBM exactly once.
    """
    B, Cin, H, W = x.shape
    Cout, _, K, _ = w.shape
    s = int(stride)
    oh = (H - K) // s + 1
    ow = (W - K) // s + 1
    assert oh > 0 and ow > 0, "input spatial dims must be >= kernel_size"

    Hp = -(-H // s)                      # ceil(H / s): rows per phase
    Wp = -(-W // s)                      # ceil(W / s): cols per phase
    M_ext = oh * Wp                      # extended output rows (ow valid + Wp-ow garbage cols)
    L = Hp * Wp + Wp                     # tail pad so shifted slabs never run out of bounds

    # ---- wrapper glue: O(|x|) bytes, bf16 before any data movement ----------
    xt = jnp.transpose(x, (0, 2, 3, 1)).astype(compute_dtype)   # (B, H, W, Cin) bf16
    phases = []
    for ph in range(s):
        for pw in range(s):
            sl = xt[:, ph::s, pw::s, :]                          # (B, <=Hp, <=Wp, Cin)
            sl = jnp.pad(sl, ((0, 0), (0, Hp - sl.shape[1]),
                              (0, Wp - sl.shape[2]), (0, 0)))
            phases.append(sl)
    xp = jnp.stack(phases, axis=0).reshape(s * s, B, Hp * Wp, Cin)
    xp = jnp.pad(xp, ((0, 0), (0, 0), (0, L - Hp * Wp), (0, 0)))  # (s*s, B, L, Cin)

    # Weight per kernel tap: w2[kh*K+kw] = w[:, :, kh, kw].T  -> (Cin, Cout)
    w2 = jnp.transpose(w, (2, 3, 1, 0)).reshape(K * K, Cin, Cout).astype(compute_dtype)
    b2 = b.reshape(1, Cout).astype(jnp.float32)

    def kernel(x_ref, w_ref, b_ref, o_ref):
        # x_ref: (s*s, 1, L, Cin) bf16   one image, all stride phases, resident in VMEM
        # w_ref: (K*K, Cin, Cout) bf16   resident across all grid steps
        # b_ref: (1, Cout)        f32    resident
        # o_ref: (1, M_ext, Cout) f32    unpadded output rows for this image
        acc = jnp.zeros((M_ext, Cout), jnp.float32)
        for kh in range(K):              # static unrolled: K*K accumulated MXU matmuls
            for kw in range(K):
                p = (kh % s) * s + (kw % s)
                base = (kh // s) * Wp + (kw // s)
                slab = x_ref[p, 0, base:base + M_ext, :]          # contiguous (M_ext, Cin)
                acc = acc + jnp.dot(slab, w_ref[kh * K + kw],
                                    preferred_element_type=jnp.float32)
        o_ref[0] = acc + b_ref[...]

    out = pl.pallas_call(
        kernel,
        out_shape=jax.ShapeDtypeStruct((B, M_ext, Cout), jnp.float32),
        grid=(B,),
        in_specs=[
            pl.BlockSpec((s * s, 1, L, Cin), lambda bi: (0, bi, 0, 0)),   # stream one image/step
            pl.BlockSpec((K * K, Cin, Cout), lambda bi: (0, 0, 0)),       # weight: resident
            pl.BlockSpec((1, Cout), lambda bi: (0, 0)),                   # bias:   resident
        ],
        out_specs=pl.BlockSpec((1, M_ext, Cout), lambda bi: (bi, 0, 0)),
        compiler_params=pltpu.CompilerParams(
            dimension_semantics=("parallel",)),                           # >=2 steps -> both v7x TCs
    )(xp, w2, b2)

    out = out.reshape(B, oh, Wp, Cout)[:, :, :ow, :]        # drop flattened-HW garbage columns
    # NCHW only for PyTorch output parity (review: drop if the consumer accepts NHWC).
    return jnp.transpose(out, (0, 3, 1, 2)).astype(x.dtype)


class ConvCapsulePallas:
    """Pallas port of ConvCapsule.forward (routing=0 branch)."""

    def __init__(self, in_channel, in_dim, out_channel, out_dim,
                 kernel_size, stride, routing=0, key=None):
        self.in_channel = in_channel
        self.in_dim = in_dim
        self.out_channel = out_channel
        self.out_dim = out_dim
        self.kernel_size = kernel_size
        self.stride = stride
        self.routing = routing
        if routing:
            # TODO(synk): EM-routing branch (grouped 1x1 conv + iterative EM) not implemented.
            raise NotImplementedError("routing>0 path not implemented")

        cin = in_channel * (in_dim + 1)
        cout = out_channel * (out_dim + 1)
        if key is None:
            key = jax.random.PRNGKey(0)
        kw, kb = jax.random.split(key)
        # Deterministic init matching PyTorch Conv2d default (kaiming-uniform bounds).
        fan_in = cin * kernel_size * kernel_size
        bound = 1.0 / math.sqrt(fan_in)
        self.weight = jax.random.uniform(
            kw, (cout, cin, kernel_size, kernel_size),
            minval=-bound, maxval=bound, dtype=jnp.float32)
        self.bias = jax.random.uniform(
            kb, (cout,), minval=-bound, maxval=bound, dtype=jnp.float32)

        stride_ = self.stride
        self._fwd = jax.jit(lambda x, w, b: conv2d_pallas(x, w, b, stride_))

    def __call__(self, x, lamda=0):
        # no-routing branch: outputs = Conv2d(x); no squash applied in forward.
        return self._fwd(x, self.weight, self.bias)


if __name__ == "__main__":
    # Module config: in_channel=4, in_dim=4, out_channel=8, out_dim=4, k=3, stride=2
    in_channel, in_dim = 4, 4
    out_channel, out_dim = 8, 4
    kernel_size, stride = 3, 2

    B, H, W = 2, 16, 16
    Cin = in_channel * (in_dim + 1)          # 20
    Cout = out_channel * (out_dim + 1)       # 40

    key = jax.random.PRNGKey(0)
    k_x, k_p = jax.random.split(key)
    x = jax.random.normal(k_x, (B, Cin, H, W), dtype=jnp.float32)

    mod = ConvCapsulePallas(in_channel, in_dim, out_channel, out_dim,
                            kernel_size, stride, routing=0, key=k_p)

    out = jax.block_until_ready(mod(x))

    oh = (H - kernel_size) // stride + 1
    ow = (W - kernel_size) // stride + 1
    assert out.shape == (B, Cout, oh, ow), out.shape

    # Tight check vs an XLA conv using the same bf16 operands / f32 accumulation.
    ref_bf16 = jax.lax.conv_general_dilated(
        x.astype(jnp.bfloat16), mod.weight.astype(jnp.bfloat16),
        window_strides=(stride, stride), padding="VALID",
        dimension_numbers=("NCHW", "OIHW", "NCHW"),
        preferred_element_type=jnp.float32) + mod.bias[None, :, None, None]
    ref_bf16 = jax.block_until_ready(ref_bf16)
    assert jnp.allclose(out, ref_bf16, atol=2e-3, rtol=2e-3), \
        float(jnp.max(jnp.abs(out - ref_bf16)))

    # Loose sanity check vs the full-f32 conv (bf16 MXU operands => relaxed tol).
    ref_f32 = jax.lax.conv_general_dilated(
        x, mod.weight, window_strides=(stride, stride), padding="VALID",
        dimension_numbers=("NCHW", "OIHW", "NCHW")) + mod.bias[None, :, None, None]
    ref_f32 = jax.block_until_ready(ref_f32)
    assert jnp.allclose(out, ref_f32, atol=6e-2, rtol=6e-2), \
        float(jnp.max(jnp.abs(out - ref_f32)))

    print("KERNEL_OK")
</pallas_src>

<mosaic_0001>
module attributes {stable_mosaic.version = 11 : i64} {
  func.func @kernel(%arg0: i32, %arg1: memref<4x1x72x20xbf16, #tpu.memory_space<vmem>>, %arg2: memref<9x20x40xbf16, #tpu.memory_space<vmem>>, %arg3: memref<1x40xf32, #tpu.memory_space<vmem>>, %arg4: memref<1x56x40xf32, #tpu.memory_space<vmem>>) attributes {dimension_semantics = [#tpu.dimension_semantics<parallel>], iteration_bounds = array<i64: 2>, scalar_prefetch = 0 : i64, scratch_operands = 0 : i64, tpu.core_type = #tpu.core_type<tc>, window_params = [{transform_indices = @transform_0, window_bounds = array<i64: 4, 1, 72, 20>}, {pipeline_mode = #tpu.pipeline_mode<synchronous>, transform_indices = @transform_1, window_bounds = array<i64: 9, 20, 40>}, {pipeline_mode = #tpu.pipeline_mode<synchronous>, transform_indices = @transform_2, window_bounds = array<i64: 1, 40>}, {transform_indices = @transform_3, window_bounds = array<i64: 1, 56, 40>}]} {
    %cst = arith.constant 0.000000e+00 : f32
    %0 = vector.broadcast %cst : f32 to vector<56x40xf32>
    %c0 = arith.constant 0 : index
    %c0_0 = arith.constant 0 : index
    %c0_1 = arith.constant 0 : index
    %c0_2 = arith.constant 0 : index
    %1 = vector.load %arg1[%c0, %c0_0, %c0_1, %c0_2] : memref<4x1x72x20xbf16, #tpu.memory_space<vmem>>, vector<1x1x56x20xbf16>
    %2 = vector.shape_cast %1 : vector<1x1x56x20xbf16> to vector<56x20xbf16>
    %c0_3 = arith.constant 0 : index
    %c0_4 = arith.constant 0 : index
    %c0_5 = arith.constant 0 : index
    %3 = vector.load %arg2[%c0_3, %c0_4, %c0_5] : memref<9x20x40xbf16, #tpu.memory_space<vmem>>, vector<1x20x40xbf16>
    %4 = vector.shape_cast %3 : vector<1x20x40xbf16> to vector<20x40xbf16>
    %cst_6 = arith.constant dense<0.000000e+00> : vector<56x40xf32>
    %5 = tpu.matmul %2, %4, %cst_6 {dimension_numbers = #tpu.dot_dimension_numbers<[1], [0], [0], [1], [0, 0, 1, 1], [], []>} : vector<56x20xbf16>, vector<20x40xbf16>, vector<56x40xf32> -> vector<56x40xf32>
    %6 = arith.addf %0, %5 : vector<56x40xf32>
    %c1 = arith.constant 1 : index
    %c0_7 = arith.constant 0 : index
    %c0_8 = arith.constant 0 : index
    %c0_9 = arith.constant 0 : index
    %7 = vector.load %arg1[%c1, %c0_7, %c0_8, %c0_9] : memref<4x1x72x20xbf16, #tpu.memory_space<vmem>>, vector<1x1x56x20xbf16>
    %8 = vector.shape_cast %7 : vector<1x1x56x20xbf16> to vector<56x20xbf16>
    %c1_10 = arith.constant 1 : index
    %c0_11 = arith.constant 0 : index
    %c0_12 = arith.constant 0 : index
    %9 = vector.load %arg2[%c1_10, %c0_11, %c0_12] : memref<9x20x40xbf16, #tpu.memory_space<vmem>>, vector<1x20x40xbf16>
    %10 = vector.shape_cast %9 : vector<1x20x40xbf16> to vector<20x40xbf16>
    %cst_13 = arith.constant dense<0.000000e+00> : vector<56x40xf32>
    %11 = tpu.matmul %8, %10, %cst_13 {dimension_numbers = #tpu.dot_dimension_numbers<[1], [0], [0], [1], [0, 0, 1, 1], [], []>} : vector<56x20xbf16>, vector<20x40xbf16>, vector<56x40xf32> -> vector<56x40xf32>
    %12 = arith.addf %6, %11 : vector<56x40xf32>
    %c0_14 = arith.constant 0 : index
    %c0_15 = arith.constant 0 : index
    %c1_16 = arith.constant 1 : index
    %c0_17 = arith.constant 0 : index
    %13 = vector.load %arg1[%c0_14, %c0_15, %c1_16, %c0_17] : memref<4x1x72x20xbf16, #tpu.memory_space<vmem>>, vector<1x1x56x20xbf16>
    %14 = vector.shape_cast %13 : vector<1x1x56x20xbf16> to vector<56x20xbf16>
    %c2 = arith.constant 2 : index
    %c0_18 = arith.constant 0 : index
    %c0_19 = arith.constant 0 : index
    %15 = vector.load %arg2[%c2, %c0_18, %c0_19] : memref<9x20x40xbf16, #tpu.memory_space<vmem>>, vector<1x20x40xbf16>
    %16 = vector.shape_cast %15 : vector<1x20x40xbf16> to vector<20x40xbf16>
    %cst_20 = arith.constant dense<0.000000e+00> : vector<56x40xf32>
    %17 = tpu.matmul %14, %16, %cst_20 {dimension_numbers = #tpu.dot_dimension_numbers<[1], [0], [0], [1], [0, 0, 1, 1], [], []>} : vector<56x20xbf16>, vector<20x40xbf16>, vector<56x40xf32> -> vector<56x40xf32>
    %18 = arith.addf %12, %17 : vector<56x40xf32>
    %c2_21 = arith.constant 2 : index
    %c0_22 = arith.constant 0 : index
    %c0_23 = arith.constant 0 : index
    %c0_24 = arith.constant 0 : index
    %19 = vector.load %arg1[%c2_21, %c0_22, %c0_23, %c0_24] : memref<4x1x72x20xbf16, #tpu.memory_space<vmem>>, vector<1x1x56x20xbf16>
    %20 = vector.shape_cast %19 : vector<1x1x56x20xbf16> to vector<56x20xbf16>
    %c3 = arith.constant 3 : index
    %c0_25 = arith.constant 0 : index
    %c0_26 = arith.constant 0 : index
    %21 = vector.load %arg2[%c3, %c0_25, %c0_26] : memref<9x20x40xbf16, #tpu.memory_space<vmem>>, vector<1x20x40xbf16>
    %22 = vector.shape_cast %21 : vector<1x20x40xbf16> to vector<20x40xbf16>
    %cst_27 = arith.constant dense<0.000000e+00> : vector<56x40xf32>
    %23 = tpu.matmul %20, %22, %cst_27 {dimension_numbers = #tpu.dot_dimension_numbers<[1], [0], [0], [1], [0, 0, 1, 1], [], []>} : vector<56x20xbf16>, vector<20x40xbf16>, vector<56x40xf32> -> vector<56x40xf32>
    %24 = arith.addf %18, %23 : vector<56x40xf32>
    %c3_28 = arith.constant 3 : index
    %c0_29 = arith.constant 0 : index
    %c0_30 = arith.constant 0 : index
    %c0_31 = arith.constant 0 : index
    %25 = vector.load %arg1[%c3_28, %c0_29, %c0_30, %c0_31] : memref<4x1x72x20xbf16, #tpu.memory_space<vmem>>, vector<1x1x56x20xbf16>
    %26 = vector.shape_cast %25 : vector<1x1x56x20xbf16> to vector<56x20xbf16>
    %c4 = arith.constant 4 : index
    %c0_32 = arith.constant 0 : index
    %c0_33 = arith.constant 0 : index
    %27 = vector.load %arg2[%c4, %c0_32, %c0_33] : memref<9x20x40xbf16, #tpu.memory_space<vmem>>, vector<1x20x40xbf16>
    %28 = vector.shape_cast %27 : vector<1x20x40xbf16> to vector<20x40xbf16>
    %cst_34 = arith.constant dense<0.000000e+00> : vector<56x40xf32>
    %29 = tpu.matmul %26, %28, %cst_34 {dimension_numbers = #tpu.dot_dimension_numbers<[1], [0], [0], [1], [0, 0, 1, 1], [], []>} : vector<56x20xbf16>, vector<20x40xbf16>, vector<56x40xf32> -> vector<56x40xf32>
    %30 = arith.addf %24, %29 : vector<56x40xf32>
    %c2_35 = arith.constant 2 : index
    %c0_36 = arith.constant 0 : index
    %c1_37 = arith.constant 1 : index
    %c0_38 = arith.constant 0 : index
    %31 = vector.load %arg1[%c2_35, %c0_36, %c1_37, %c0_38] : memref<4x1x72x20xbf16, #tpu.memory_space<vmem>>, vector<1x1x56x20xbf16>
    %32 = vector.shape_cast %31 : vector<1x1x56x20xbf16> to vector<56x20xbf16>
    %c5 = arith.constant 5 : index
    %c0_39 = arith.constant 0 : index
    %c0_40 = arith.constant 0 : index
    %33 = vector.load %arg2[%c5, %c0_39, %c0_40] : memref<9x20x40xbf16, #tpu.memory_space<vmem>>, vector<1x20x40xbf16>
    %34 = vector.shape_cast %33 : vector<1x20x40xbf16> to vector<20x40xbf16>
    %cst_41 = arith.constant dense<0.000000e+00> : vector<56x40xf32>
    %35 = tpu.matmul %32, %34, %cst_41 {dimension_numbers = #tpu.dot_dimension_numbers<[1], [0], [0], [1], [0, 0, 1, 1], [], []>} : vector<56x20xbf16>, vector<20x40xbf16>, vector<56x40xf32> -> vector<56x40xf32>
    %36 = arith.addf %30, %35 : vector<56x40xf32>
    %c0_42 = arith.constant 0 : index
    %c0_43 = arith.constant 0 : index
    %c8 = arith.constant 8 : index
    %c0_44 = arith.constant 0 : index
    %37 = vector.load %arg1[%c0_42, %c0_43, %c8, %c0_44] : memref<4x1x72x20xbf16, #tpu.memory_space<vmem>>, vector<1x1x56x20xbf16>
    %38 = vector.shape_cast %37 : vector<1x1x56x20xbf16> to vector<56x20xbf16>
    %c6 = arith.constant 6 : index
    %c0_45 = arith.constant 0 : index
    %c0_46 = arith.constant 0 : index
    %39 = vector.load %arg2[%c6, %c0_45, %c0_46] : memref<9x20x40xbf16, #tpu.memory_space<vmem>>, vector<1x20x40xbf16>
    %40 = vector.shape_cast %39 : vector<1x20x40xbf16> to vector<20x40xbf16>
    %cst_47 = arith.constant dense<0.000000e+00> : vector<56x40xf32>
    %41 = tpu.matmul %38, %40, %cst_47 {dimension_numbers = #tpu.dot_dimension_numbers<[1], [0], [0], [1], [0, 0, 1, 1], [], []>} : vector<56x20xbf16>, vector<20x40xbf16>, vector<56x40xf32> -> vector<56x40xf32>
    %42 = arith.addf %36, %41 : vector<56x40xf32>
    %c1_48 = arith.constant 1 : index
    %c0_49 = arith.constant 0 : index
    %c8_50 = arith.constant 8 : index
    %c0_51 = arith.constant 0 : index
    %43 = vector.load %arg1[%c1_48, %c0_49, %c8_50, %c0_51] : memref<4x1x72x20xbf16, #tpu.memory_space<vmem>>, vector<1x1x56x20xbf16>
    %44 = vector.shape_cast %43 : vector<1x1x56x20xbf16> to vector<56x20xbf16>
    %c7 = arith.constant 7 : index
    %c0_52 = arith.constant 0 : index
    %c0_53 = arith.constant 0 : index
    %45 = vector.load %arg2[%c7, %c0_52, %c0_53] : memref<9x20x40xbf16, #tpu.memory_space<vmem>>, vector<1x20x40xbf16>
    %46 = vector.shape_cast %45 : vector<1x20x40xbf16> to vector<20x40xbf16>
    %cst_54 = arith.constant dense<0.000000e+00> : vector<56x40xf32>
    %47 = tpu.matmul %44, %46, %cst_54 {dimension_numbers = #tpu.dot_dimension_numbers<[1], [0], [0], [1], [0, 0, 1, 1], [], []>} : vector<56x20xbf16>, vector<20x40xbf16>, vector<56x40xf32> -> vector<56x40xf32>
    %48 = arith.addf %42, %47 : vector<56x40xf32>
    %c0_55 = arith.constant 0 : index
    %c0_56 = arith.constant 0 : index
    %c9 = arith.constant 9 : index
    %c0_57 = arith.constant 0 : index
    %49 = vector.load %arg1[%c0_55, %c0_56, %c9, %c0_57] : memref<4x1x72x20xbf16, #tpu.memory_space<vmem>>, vector<1x1x56x20xbf16>
    %50 = vector.shape_cast %49 : vector<1x1x56x20xbf16> to vector<56x20xbf16>
    %c8_58 = arith.constant 8 : index
    %c0_59 = arith.constant 0 : index
    %c0_60 = arith.constant 0 : index
    %51 = vector.load %arg2[%c8_58, %c0_59, %c0_60] : memref<9x20x40xbf16, #tpu.memory_space<vmem>>, vector<1x20x40xbf16>
    %52 = vector.shape_cast %51 : vector<1x20x40xbf16> to vector<20x40xbf16>
    %cst_61 = arith.constant dense<0.000000e+00> : vector<56x40xf32>
    %53 = tpu.matmul %50, %52, %cst_61 {dimension_numbers = #tpu.dot_dimension_numbers<[1], [0], [0], [1], [0, 0, 1, 1], [], []>} : vector<56x20xbf16>, vector<20x40xbf16>, vector<56x40xf32> -> vector<56x40xf32>
    %54 = arith.addf %48, %53 : vector<56x40xf32>
    %c0_62 = arith.constant 0 : index
    %c0_63 = arith.constant 0 : index
    %55 = vector.load %arg3[%c0_62, %c0_63] : memref<1x40xf32, #tpu.memory_space<vmem>>, vector<1x40xf32>
    %56 = vector.broadcast %55 : vector<1x40xf32> to vector<56x40xf32>
    %57 = arith.addf %54, %56 : vector<56x40xf32>
    %c0_64 = arith.constant 0 : index
    %c0_65 = arith.constant 0 : index
    %c0_66 = arith.constant 0 : index
    %58 = vector.load %arg4[%c0_64, %c0_65, %c0_66] : memref<1x56x40xf32, #tpu.memory_space<vmem>>, vector<1x56x40xf32>
    %59 = vector.shape_cast %58 : vector<1x56x40xf32> to vector<56x40xf32>
    %60 = vector.shape_cast %57 : vector<56x40xf32> to vector<1x56x40xf32>
    tpu.vector_store %arg4[%c0_64, %c0_65, %c0_66], %60 {strides = array<i32>} : memref<1x56x40xf32, #tpu.memory_space<vmem>>, vector<1x56x40xf32>,
    return
  }
  func.func @transform_0(%arg0: i32) -> (i32, i32, i32, i32) {
    %c0_i32 = arith.constant 0 : i32
    %c0_i32_0 = arith.constant 0 : i32
    %c0_i32_1 = arith.constant 0 : i32
    %c0_i32_2 = arith.constant 0 : i32
    return %c0_i32, %arg0, %c0_i32_0, %c0_i32_1 : i32, i32, i32, i32
  }
  func.func @transform_1(%arg0: i32) -> (i32, i32, i32) {
    %c0_i32 = arith.constant 0 : i32
    %c0_i32_0 = arith.constant 0 : i32
    %c0_i32_1 = arith.constant 0 : i32
    %c0_i32_2 = arith.constant 0 : i32
    return %c0_i32, %c0_i32_0, %c0_i32_1 : i32, i32, i32
  }
  func.func @transform_2(%arg0: i32) -> (i32, i32) {
    %c0_i32 = arith.constant 0 : i32
    %c0_i32_0 = arith.constant 0 : i32
    %c0_i32_1 = arith.constant 0 : i32
    return %c0_i32, %c0_i32_0 : i32, i32
  }
  func.func @transform_3(%arg0: i32) -> (i32, i32, i32) {
    %c0_i32 = arith.constant 0 : i32
    %c0_i32_0 = arith.constant 0 : i32
    %c0_i32_1 = arith.constant 0 : i32
    return %arg0, %c0_i32, %c0_i32_0 : i32, i32, i32
  }
}

</mosaic_0001>

<llo_original>
// kernel: _lambda_.1
$region0: #{_lambda_.1}
  #allocation0 [shape = 'u32[]', space=smem, size = 0x4, offset = 0x4, fixed_abs, tag = 'smem constant byte address 0x4 - core index']
  #allocation1 [shape = 'u32[144,128]{1,0:T(1,128)}', space=vmem, size = 0x12000, scoped, tag = 'internal scratch']
  %s0 = inlined_call_operand.vmem [shape: bf16[4,2,72,20], index: 0, kind: input, shape index: {}]
  %s1 = inlined_call_operand.vmem [shape: bf16[9,20,40], index: 1, kind: input, shape index: {}]
  %s2 = inlined_call_operand.vmem [shape: f32[1,40], index: 2, kind: input, shape index: {}]
  %s3 = inlined_call_operand.vmem [shape: f32[2,56,40], index: 3, kind: output, shape index: {}]
  %s4 = sld [smem:[#allocation0]]
  $region86: #{_lambda_.1} parent=0
    _
  %s6 = ssub.s32 1, %s4
  %s7 = scalar_select 0, %s6, %s4
  $region1: #{_lambda_.1} parent=0
    #allocation2 [shape = 'u8[147456]{0}', space=vmem, size = 0x24000, scoped, tag = 'input window, operand 0']
    loop: start=0, step=1, limit=4
    $region2: #{_lambda_.1} parent=1 // loop_pre_header
      _
    $region3: #{_lambda_.1} parent=1 // loop_header
      %s9 = sphi 0, %s13
      %p10 = scmp.ge.s32.totalorder %s9, 4
      %s19 = sphi 0, %s21
      %s22 = sphi 0, %s19
      %s23 = sphi 0, %s22
      %s39 = sphi 0, %s23
      %s43 = sphi 0, %s43
      %s45 = sphi 0, %s43
      %s46 = sphi 0, %s45
      %s60 = sphi 0, %s46
      %s64 = sphi 0, %s64
      %s66 = sphi 0, %s64
      %s67 = sphi 0, %s66
      %s81 = sphi 0, %s67
      %s87 = sphi 0, %s89
      %s90 = sphi 0, %s87
      %s91 = sphi 0, %s90
      %s107 = sphi 0, %s91
    $region4: #{_lambda_.1} parent=1 // loop_header_branch
      %12 = sbr.rel (%p10) target = $region8
    $region5: #{_lambda_.1} parent=1 // loop_body
      %s14 = ssub.s32 %s9, 1
      %s15 = ssub.s32 %s9, 2
      %s16 = sadd.s32 %s9, 1
      %s17 = ssub.s32 %s9, %s16
      %p18 = scmp.eq.s32.totalorder %s17, 0
      %s20 = sadd.s32 %s19, 1
      %s21 = scalar_select %p18, %s19, %s20
      %p24 = pneg %p18
      %p25 = scmp.eq.s32.totalorder %s9, 1
      %p26 = por %p24, %p25
      %p27 = scmp.ne.s32.totalorder %s19, %s22
      %p28 = scmp.eq.s32.totalorder %s9, 0
      %p29 = por %p27, %p28
      %p30 = scmp.ne.s32.totalorder %s19, %s22
      %p31 = scmp.eq.s32.totalorder %s14, 1
      %p32 = por %p30, %p31
      %p33 = scmp.ne.s32.totalorder %s22, %s23
      %p34 = scmp.eq.s32.totalorder %s14, 0
      %p35 = por %p33, %p34
      %p36 = scmp.ne.s32.totalorder %s22, %s23
      %p37 = scmp.eq.s32.totalorder %s15, 1
      %p38 = por %p36, %p37
      %p40 = scmp.ne.s32.totalorder %s23, %s39
      %p41 = scmp.eq.s32.totalorder %s15, 0
      %p42 = por %p40, %p41
      %s44 = sadd.s32 %s43, 1
      %p47 = scmp.eq.s32.totalorder %s9, 1
      %p48 = scmp.ne.s32.totalorder %s43, %s45
      %p49 = scmp.eq.s32.totalorder %s9, 0
      %p50 = por %p48, %p49
      %p51 = scmp.ne.s32.totalorder %s43, %s45
      %p52 = scmp.eq.s32.totalorder %s14, 1
      %p53 = por %p51, %p52
      %p54 = scmp.ne.s32.totalorder %s45, %s46
      %p55 = scmp.eq.s32.totalorder %s14, 0
      %p56 = por %p54, %p55
      %p57 = scmp.ne.s32.totalorder %s45, %s46
      %p58 = scmp.eq.s32.totalorder %s15, 1
      %p59 = por %p57, %p58
      %p61 = scmp.ne.s32.totalorder %s46, %s60
      %p62 = scmp.eq.s32.totalorder %s15, 0
      %p63 = por %p61, %p62
      %s65 = sadd.s32 %s64, 1
      %p68 = scmp.eq.s32.totalorder %s9, 1
      %p69 = scmp.ne.s32.totalorder %s64, %s66
      %p70 = scmp.eq.s32.totalorder %s9, 0
      %p71 = por %p69, %p70
      %p72 = scmp.ne.s32.totalorder %s64, %s66
      %p73 = scmp.eq.s32.totalorder %s14, 1
      %p74 = por %p72, %p73
      %p75 = scmp.ne.s32.totalorder %s66, %s67
      %p76 = scmp.eq.s32.totalorder %s14, 0
      %p77 = por %p75, %p76
      %p78 = scmp.ne.s32.totalorder %s66, %s67
      %p79 = scmp.eq.s32.totalorder %s15, 1
      %p80 = por %p78, %p79
      %p82 = scmp.ne.s32.totalorder %s67, %s81
      %p83 = scmp.eq.s32.totalorder %s15, 0
      %p84 = por %p82, %p83
      %s85 = ssub.s32 %s9, %s16
      %p86 = scmp.eq.s32.totalorder %s85, 0
      %s88 = sadd.s32 %s87, 1
      %s89 = scalar_select %p86, %s87, %s88
      %p92 = pneg %p86
      %p93 = scmp.eq.s32.totalorder %s9, 1
      %p94 = por %p92, %p93
      %p95 = scmp.ne.s32.totalorder %s87, %s90
      %p96 = scmp.eq.s32.totalorder %s9, 0
      %p97 = por %p95, %p96
      %p98 = scmp.ne.s32.totalorder %s87, %s90
      %p99 = scmp.eq.s32.totalorder %s14, 1
      %p100 = por %p98, %p99
      %p101 = scmp.ne.s32.totalorder %s90, %s91
      %p102 = scmp.eq.s32.totalorder %s14, 0
      %p103 = por %p101, %p102
      %p104 = scmp.ne.s32.totalorder %s90, %s91
      %p105 = scmp.eq.s32.totalorder %s15, 1
      %p106 = por %p104, %p105
      %p108 = scmp.ne.s32.totalorder %s91, %s107
      %p109 = scmp.eq.s32.totalorder %s15, 0
      %p110 = por %p108, %p109
      %p111 = scmp.le.s32.totalorder 1, %s9
      %p112 = scmp.lt.s32.totalorder %s9, 3
      %p113 = pnand %p111, %p112
      %p114 = pneg %p113
      // Predicated region
      $region9: #{_lambda_.1} parent=5 // pred_check
        _
      $region10: #{_lambda_.1} parent=5 // pred_check_branch
        %116 = sbr.rel (%p113) target = $region12
      $region11: #{_lambda_.1} parent=5 // pred_region
        %s117 = ssub.s32 %s9, 1
        // Predicated region
        $region13: #{_lambda_.1} parent=11 // pred_check
          %p118 = pneg %p56
        $region14: #{_lambda_.1} parent=11 // pred_check_branch
          %120 = sbr.rel (%p118) target = $region16
        $region15: #{_lambda_.1} parent=11 // pred_region
          _
        $region16: #{_lambda_.1} parent=11 // pred_fallthru
          _
        // Predicated region
        $region17: #{_lambda_.1} parent=11 // pred_check
          %p121 = pneg %p77
        $region18: #{_lambda_.1} parent=11 // pred_check_branch
          %123 = sbr.rel (%p121) target = $region20
        $region19: #{_lambda_.1} parent=11 // pred_region
          _
        $region20: #{_lambda_.1} parent=11 // pred_fallthru
          _
      $region12: #{_lambda_.1} parent=5 // pred_fallthru
        _
      %p124 = scmp.lt.s32.totalorder %s9, 2
      // Predicated region
      $region21: #{_lambda_.1} parent=5 // pred_check
        %p125 = pneg %p124
      $region22: #{_lambda_.1} parent=5 // pred_check_branch
        %127 = sbr.rel (%p125) target = $region24
      $region23: #{_lambda_.1} parent=5 // pred_region
        // Predicated region
        $region25: #{_lambda_.1} parent=23 // pred_check
          %p128 = pneg %p29
        $region26: #{_lambda_.1} parent=23 // pred_check_branch
          %130 = sbr.rel (%p128) target = $region28
        $region27: #{_lambda_.1} parent=23 // pred_region
          %s131 = sand.u32 %s19, 1
          %s132 = sand.u32 %s19, 1
          %s133 = smul.addr %s132, 144
          %s134 = scalar_lea.vmem [#allocation2], %s133
          %s135 = smul.addr %s9, 9
          %s136 = smul.addr %s135, 4
          %s137 = scalar_lea.vmem %s0, %s136
          // Predicated region
          $region29: #{_lambda_.1} parent=27 // pred_check
            _
          $region30: #{_lambda_.1} parent=27 // pred_check_branch
            %139 = sbr.rel (0) target = $region32
          $region31: #{_lambda_.1} parent=27 // pred_region
            // Predicated region
            $region33: #{_lambda_.1} parent=31 // pred_check
              _
            $region34: #{_lambda_.1} parent=31 // pred_check_branch
              %141 = sbr.rel target = $region36
            $region35: #{_lambda_.1} parent=31 // pred_region
              // Predicated region
              $region48: #{_lambda_.1} parent=35 // pred_check
                _
              $region49: #{_lambda_.1} parent=35 // pred_check_branch
                %226 = sbr.rel (0) target = $region51
              $region50: #{_lambda_.1} parent=35 // pred_region
                loop: start=0, step=1, limit=1
                $region52: #{_lambda_.1} parent=50 // loop_pre_header
                  _
                $region53: #{_lambda_.1} parent=50 // loop_header
                  %s228 = sphi 0, %s232
                  %p229 = scmp.ge.s32.totalorder %s228, 1
                  %s233 = sphi %s137, %s137
                  %s234 = sphi %s134, %s134
                $region54: #{_lambda_.1} parent=50 // loop_header_branch
                  %231 = sbr.rel (%p229) target = $region58
                $region55: #{_lambda_.1} parent=50 // loop_body
                  _
                $region56: #{_lambda_.1} parent=50 // loop_footer
                  %s232 = sadd.s32 1, %s228
                $region57: #{_lambda_.1} parent=50 // loop_footer_branch
                  %227 = sbr.rel target = $region53
                $region58: #{_lambda_.1} parent=50 // loop_exit
                  _
                loop: start=0, step=1, limit=1
                $region59: #{_lambda_.1} parent=50 // loop_pre_header
                  _
                $region60: #{_lambda_.1} parent=50 // loop_header
                  %s237 = sphi 0, %s241
                  %p238 = scmp.ge.s32.totalorder %s237, 1
                  %s242 = sphi %s137, %s137
                  %s243 = sphi %s134, %s134
                $region61: #{_lambda_.1} parent=50 // loop_header_branch
                  %240 = sbr.rel (%p238) target = $region65
                $region62: #{_lambda_.1} parent=50 // loop_body
                  %v244 = vld [vmem:[%s242] sm:$0xf]
                  %245 = vst [vmem:[%s243] sm:$0xf] %v244
                  %v246 = vld [vmem:[%s242 + $0x4] sm:$0xf]
                  %247 = vst [vmem:[%s243 + $0x4] sm:$0xf] %v246
                  %v248 = vld [vmem:[%s242 + $0x8] sm:$0xf]
                  %249 = vst [vmem:[%s243 + $0x8] sm:$0xf] %v248
                  %v250 = vld [vmem:[%s242 + $0xc] sm:$0xf]
                  %251 = vst [vmem:[%s243 + $0xc] sm:$0xf] %v250
                  %v252 = vld [vmem:[%s242 + $0x10] sm:$0xf]
                  %253 = vst [vmem:[%s243 + $0x10] sm:$0xf] %v252
                  %v254 = vld [vmem:[%s242 + $0x14] sm:$0xf]
                  %255 = vst [vmem:[%s243 + $0x14] sm:$0xf] %v254
                  %v256 = vld [vmem:[%s242 + $0x18] sm:$0xf]
                  %257 = vst [vmem:[%s243 + $0x18] sm:$0xf] %v256
                  %v258 = vld [vmem:[%s242 + $0x1c] sm:$0xf]
                  %259 = vst [vmem:[%s243 + $0x1c] sm:$0xf] %v258
                  %v260 = vld [vmem:[%s242 + $0x20] sm:$0xf]
                  %261 = vst [vmem:[%s243 + $0x20] sm:$0xf] %v260
                  %v262 = vld [vmem:[%s242 + $0x48] sm:$0xf]
                  %263 = vst [vmem:[%s243 + $0x24] sm:$0xf] %v262
                  %v264 = vld [vmem:[%s242 + $0x4c] sm:$0xf]
                  %265 = vst [vmem:[%s243 + $0x28] sm:$0xf] %v264
                  %v266 = vld [vmem:[%s242 + $0x50] sm:$0xf]
                  %267 = vst [vmem:[%s243 + $0x2c] sm:$0xf] %v266
                  %v268 = vld [vmem:[%s242 + $0x54] sm:$0xf]
                  %269 = vst [vmem:[%s243 + $0x30] sm:$0xf] %v268
                  %v270 = vld [vmem:[%s242 + $0x58] sm:$0xf]
                  %271 = vst [vmem:[%s243 + $0x34] sm:$0xf] %v270
                  %v272 = vld [vmem:[%s242 + $0x5c] sm:$0xf]
                  %273 = vst [vmem:[%s243 + $0x38] sm:$0xf] %v272
                  %v274 = vld [vmem:[%s242 + $0x60] sm:$0xf]
                  %275 = vst [vmem:[%s243 + $0x3c] sm:$0xf] %v274
                  %v276 = vld [vmem:[%s242 + $0x64] sm:$0xf]
                  %277 = vst [vmem:[%s243 + $0x40] sm:$0xf] %v276
                  %v278 = vld [vmem:[%s242 + $0x68] sm:$0xf]
                  %279 = vst [vmem:[%s243 + $0x44] sm:$0xf] %v278
                  %v280 = vld [vmem:[%s242 + $0x90] sm:$0xf]
                  %281 = vst [vmem:[%s243 + $0x48] sm:$0xf] %v280
                  %v282 = vld [vmem:[%s242 + $0x94] sm:$0xf]
                  %283 = vst [vmem:[%s243 + $0x4c] sm:$0xf] %v282
                  %v284 = vld [vmem:[%s242 + $0x98] sm:$0xf]
                  %285 = vst [vmem:[%s243 + $0x50] sm:$0xf] %v284
                  %v286 = vld [vmem:[%s242 + $0x9c] sm:$0xf]
                  %287 = vst [vmem:[%s243 + $0x54] sm:$0xf] %v286
                  %v288 = vld [vmem:[%s242 + $0xa0] sm:$0xf]
                  %289 = vst [vmem:[%s243 + $0x58] sm:$0xf] %v288
                  %v290 = vld [vmem:[%s242 + $0xa4] sm:$0xf]
                  %291 = vst [vmem:[%s243 + $0x5c] sm:$0xf] %v290
                  %v292 = vld [vmem:[%s242 + $0xa8] sm:$0xf]
                  %293 = vst [vmem:[%s243 + $0x60] sm:$0xf] %v292
                  %v294 = vld [vmem:[%s242 + $0xac] sm:$0xf]
                  %295 = vst [vmem:[%s243 + $0x64] sm:$0xf] %v294
                  %v296 = vld [vmem:[%s242 + $0xb0] sm:$0xf]
                  %297 = vst [vmem:[%s243 + $0x68] sm:$0xf] %v296
                  %v298 = vld [vmem:[%s242 + $0xd8] sm:$0xf]
                  %299 = vst [vmem:[%s243 + $0x6c] sm:$0xf] %v298
                  %v300 = vld [vmem:[%s242 + $0xdc] sm:$0xf]
                  %301 = vst [vmem:[%s243 + $0x70] sm:$0xf] %v300
                  %v302 = vld [vmem:[%s242 + $0xe0] sm:$0xf]
                  %303 = vst [vmem:[%s243 + $0x74] sm:$0xf] %v302
                  %v304 = vld [vmem:[%s242 + $0xe4] sm:$0xf]
                  %305 = vst [vmem:[%s243 + $0x78] sm:$0xf] %v304
                  %v306 = vld [vmem:[%s242 + $0xe8] sm:$0xf]
                  %307 = vst [vmem:[%s243 + $0x7c] sm:$0xf] %v306
                  %v308 = vld [vmem:[%s242 + $0xec] sm:$0xf]
                  %309 = vst [vmem:[%s243 + $0x80] sm:$0xf] %v308
                  %v310 = vld [vmem:[%s242 + $0xf0] sm:$0xf]
                  %311 = vst [vmem:[%s243 + $0x84] sm:$0xf] %v310
                  %v312 = vld [vmem:[%s242 + $0xf4] sm:$0xf]
                  %313 = vst [vmem:[%s243 + $0x88] sm:$0xf] %v312
                  %v314 = vld [vmem:[%s242 + $0xf8] sm:$0xf]
                  %315 = vst [vmem:[%s243 + $0x8c] sm:$0xf] %v314
                $region63: #{_lambda_.1} parent=50 // loop_footer
                  %s241 = sadd.s32 1, %s237
                $region64: #{_lambda_.1} parent=50 // loop_footer_branch
                  %236 = sbr.rel target = $region60
                $region65: #{_lambda_.1} parent=50 // loop_exit
                  _
              $region51: #{_lambda_.1} parent=35 // pred_fallthru
                _
            $region36: #{_lambda_.1} parent=31 // pred_fallthru
              _
            // Predicated region
            $region37: #{_lambda_.1} parent=31 // pred_check
              _
            $region38: #{_lambda_.1} parent=31 // pred_check_branch
              %143 = sbr.rel (0) target = $region40
            $region39: #{_lambda_.1} parent=31 // pred_region
              loop: start=0, step=1, limit=1
              $region41: #{_lambda_.1} parent=39 // loop_pre_header
                _
              $region42: #{_lambda_.1} parent=39 // loop_header
                %s146 = sphi 0, %s150
                %p147 = scmp.ge.s32.totalorder %s146, 1
                %s151 = sphi %s137, %s137
                %s152 = sphi %s134, %s134
              $region43: #{_lambda_.1} parent=39 // loop_header_branch
                %149 = sbr.rel (%p147) target = $region47
              $region44: #{_lambda_.1} parent=39 // loop_body
                %v153 = vld [vmem:[%s151] sm:$0xf]
                %154 = vst [vmem:[%s152] sm:$0xf] %v153
                %v155 = vld [vmem:[%s151 + $0x4] sm:$0xf]
                %156 = vst [vmem:[%s152 + $0x4] sm:$0xf] %v155
                %v157 = vld [vmem:[%s151 + $0x8] sm:$0xf]
                %158 = vst [vmem:[%s152 + $0x8] sm:$0xf] %v157
                %v159 = vld [vmem:[%s151 + $0xc] sm:$0xf]
                %160 = vst [vmem:[%s152 + $0xc] sm:$0xf] %v159
                %v161 = vld [vmem:[%s151 + $0x10] sm:$0xf]
                %162 = vst [vmem:[%s152 + $0x10] sm:$0xf] %v161
                %v163 = vld [vmem:[%s151 + $0x14] sm:$0xf]
                %164 = vst [vmem:[%s152 + $0x14] sm:$0xf] %v163
                %v165 = vld [vmem:[%s151 + $0x18] sm:$0xf]
                %166 = vst [vmem:[%s152 + $0x18] sm:$0xf] %v165
                %v167 = vld [vmem:[%s151 + $0x1c] sm:$0xf]
                %168 = vst [vmem:[%s152 + $0x1c] sm:$0xf] %v167
                %v169 = vld [vmem:[%s151 + $0x20] sm:$0xf]
                %170 = vst [vmem:[%s152 + $0x20] sm:$0xf] %v169
                %v171 = vld [vmem:[%s151 + $0x48] sm:$0xf]
                %172 = vst [vmem:[%s152 + $0x24] sm:$0xf] %v171
                %v173 = vld [vmem:[%s151 + $0x4c] sm:$0xf]
                %174 = vst [vmem:[%s152 + $0x28] sm:$0xf] %v173
                %v175 = vld [vmem:[%s151 + $0x50] sm:$0xf]
                %176 = vst [vmem:[%s152 + $0x2c] sm:$0xf] %v175
                %v177 = vld [vmem:[%s151 + $0x54] sm:$0xf]
                %178 = vst [vmem:[%s152 + $0x30] sm:$0xf] %v177
                %v179 = vld [vmem:[%s151 + $0x58] sm:$0xf]
                %180 = vst [vmem:[%s152 + $0x34] sm:$0xf] %v179
                %v181 = vld [vmem:[%s151 + $0x5c] sm:$0xf]
                %182 = vst [vmem:[%s152 + $0x38] sm:$0xf] %v181
                %v183 = vld [vmem:[%s151 + $0x60] sm:$0xf]
                %184 = vst [vmem:[%s152 + $0x3c] sm:$0xf] %v183
                %v185 = vld [vmem:[%s151 + $0x64] sm:$0xf]
                %186 = vst [vmem:[%s152 + $0x40] sm:$0xf] %v185
                %v187 = vld [vmem:[%s151 + $0x68] sm:$0xf]
                %188 = vst [vmem:[%s152 + $0x44] sm:$0xf] %v187
                %v189 = vld [vmem:[%s151 + $0x90] sm:$0xf]
                %190 = vst [vmem:[%s152 + $0x48] sm:$0xf] %v189
                %v191 = vld [vmem:[%s151 + $0x94] sm:$0xf]
                %192 = vst [vmem:[%s152 + $0x4c] sm:$0xf] %v191
                %v193 = vld [vmem:[%s151 + $0x98] sm:$0xf]
                %194 = vst [vmem:[%s152 + $0x50] sm:$0xf] %v193
                %v195 = vld [vmem:[%s151 + $0x9c] sm:$0xf]
                %196 = vst [vmem:[%s152 + $0x54] sm:$0xf] %v195
                %v197 = vld [vmem:[%s151 + $0xa0] sm:$0xf]
                %198 = vst [vmem:[%s152 + $0x58] sm:$0xf] %v197
                %v199 = vld [vmem:[%s151 + $0xa4] sm:$0xf]
                %200 = vst [vmem:[%s152 + $0x5c] sm:$0xf] %v199
                %v201 = vld [vmem:[%s151 + $0xa8] sm:$0xf]
                %202 = vst [vmem:[%s152 + $0x60] sm:$0xf] %v201
                %v203 = vld [vmem:[%s151 + $0xac] sm:$0xf]
                %204 = vst [vmem:[%s152 + $0x64] sm:$0xf] %v203
                %v205 = vld [vmem:[%s151 + $0xb0] sm:$0xf]
                %206 = vst [vmem:[%s152 + $0x68] sm:$0xf] %v205
                %v207 = vld [vmem:[%s151 + $0xd8] sm:$0xf]
                %208 = vst [vmem:[%s152 + $0x6c] sm:$0xf] %v207
                %v209 = vld [vmem:[%s151 + $0xdc] sm:$0xf]
                %210 = vst [vmem:[%s152 + $0x70] sm:$0xf] %v209
                %v211 = vld [vmem:[%s151 + $0xe0] sm:$0xf]
                %212 = vst [vmem:[%s152 + $0x74] sm:$0xf] %v211
                %v213 = vld [vmem:[%s151 + $0xe4] sm:$0xf]
                %214 = vst [vmem:[%s152 + $0x78] sm:$0xf] %v213
                %v215 = vld [vmem:[%s151 + $0xe8] sm:$0xf]
                %216 = vst [vmem:[%s152 + $0x7c] sm:$0xf] %v215
                %v217 = vld [vmem:[%s151 + $0xec] sm:$0xf]
                %218 = vst [vmem:[%s152 + $0x80] sm:$0xf] %v217
                %v219 = vld [vmem:[%s151 + $0xf0] sm:$0xf]
                %220 = vst [vmem:[%s152 + $0x84] sm:$0xf] %v219
                %v221 = vld [vmem:[%s151 + $0xf4] sm:$0xf]
                %222 = vst [vmem:[%s152 + $0x88] sm:$0xf] %v221
                %v223 = vld [vmem:[%s151 + $0xf8] sm:$0xf]
                %224 = vst [vmem:[%s152 + $0x8c] sm:$0xf] %v223
              $region45: #{_lambda_.1} parent=39 // loop_footer
                %s150 = sadd.s32 1, %s146
              $region46: #{_lambda_.1} parent=39 // loop_footer_branch
                %145 = sbr.rel target = $region42
              $region47: #{_lambda_.1} parent=39 // loop_exit
                _
            $region40: #{_lambda_.1} parent=31 // pred_fallthru
              _
          $region32: #{_lambda_.1} parent=27 // pred_fallthru
            _
          %316 = vnop
        $region28: #{_lambda_.1} parent=23 // pred_fallthru
          _
      $region24: #{_lambda_.1} parent=5 // pred_fallthru
        _
      %p317 = scmp.le.s32.totalorder 1, %s9
      %p318 = scmp.lt.s32.totalorder %s9, 3
      %p319 = pnand %p317, %p318
      %p320 = pneg %p319
      // Predicated region
      $region66: #{_lambda_.1} parent=5 // pred_check
        _
      $region67: #{_lambda_.1} parent=5 // pred_check_branch
        %322 = sbr.rel (%p319) target = $region69
      $region68: #{_lambda_.1} parent=5 // pred_region
        %s323 = ssub.s32 %s9, 1
        %s324 = sand.u32 %s22, 1
        %s325 = sand.u32 %s22, 1
        %s326 = smul.addr %s325, 144
        %s327 = scalar_lea.vmem [#allocation2], %s326
        // Predicated region
        $region70: #{_lambda_.1} parent=68 // pred_check
          %p328 = pneg %p35
        $region71: #{_lambda_.1} parent=68 // pred_check_branch
          %330 = sbr.rel (%p328) target = $region73
        $region72: #{_lambda_.1} parent=68 // pred_region
          _
        $region73: #{_lambda_.1} parent=68 // pred_fallthru
          _
        %s331 = sand.u32 %s22, 1
        %s332 = sand.u32 %s22, 1
        %s333 = smul.addr %s332, 144
        %s334 = scalar_lea.vmem [#allocation2], %s333
        %p335 = pneg %p35
        %p336 = pneg %p32
        %p337 = pneg %p56
        %p338 = pneg %p53
        %p339 = pneg %p77
        %p340 = pneg %p74
        %p341 = pneg %p103
        %p342 = pneg %p100
        %p343 = scmp.lt.s32.totalorder %s14, 1
        %s344 = scalar_select %p343, %s14, 1
        %s345 = smul.addr %s344, 7
        %s346 = smul.addr %s345, 8
        %s347 = scalar_lea.vmem %s3, %s346
        %p348 = scmp.lt.s32.totalorder %s14, 1
        %s349 = scalar_select %p348, %s14, 1
        %s350 = smul.addr %s349, 7
        %s351 = smul.addr %s350, 8
        %s352 = scalar_lea.vmem %s3, %s351
        %v354 = vld [vmem:[%s327] sm:$0xf]
        %v355 = vld [vmem:[%s327 + $0x4] sm:$0xf]
        %v356 = vld [vmem:[%s327 + $0x8] sm:$0xf]
        %v357 = vld [vmem:[%s327 + $0xc] sm:$0xf]
        %v358 = vld [vmem:[%s327 + $0x10] sm:$0xf]
        %v359 = vld [vmem:[%s327 + $0x14] sm:$0xf]
        %v360 = vld [vmem:[%s327 + $0x18] sm:$0xf]
        %v361 = vld [vmem:[%s1] sm:$0xf]
        %v362 = vld [vmem:[%s1 + $0x4] sm:$0xf]
        %v363 = vld [vmem:[%s1 + $0x8] sm:$0x3]
        %s364 = scalar_lea.vmem %s327, 36 [#allocation2]
        %v365 = vld [vmem:[%s364] sm:$0xf]
        %v366 = vld [vmem:[%s364 + $0x4] sm:$0xf]
        %v367 = vld [vmem:[%s364 + $0x8] sm:$0xf]
        %v368 = vld [vmem:[%s364 + $0xc] sm:$0xf]
        %v369 = vld [vmem:[%s364 + $0x10] sm:$0xf]
        %v370 = vld [vmem:[%s364 + $0x14] sm:$0xf]
        %v371 = vld [vmem:[%s364 + $0x18] sm:$0xf]
        %s372 = scalar_lea.vmem %s1, 12
        %v373 = vld [vmem:[%s372] sm:$0xf]
        %v374 = vld [vmem:[%s372 + $0x4] sm:$0xf]
        %v375 = vld [vmem:[%s372 + $0x8] sm:$0x3]
        %v383 = vunpack.c.l.b16 %v365
        %v384 = vunpack.c.l.b16 %v366
        %v385 = vunpack.c.l.b16 %v367
        %v386 = vunpack.c.l.b16 %v368
        %v387 = vunpack.c.l.b16 %v369
        %v388 = vunpack.c.l.b16 %v370
        %v389 = vunpack.c.l.b16 %v371
        %v390 = vpack.c.b16 %v384, %v383
        %v391 = vpack.c.b16 %v386, %v385
        %v392 = vpack.c.b16 %v388, %v387
        %v393 = vpack.c.b16 %v389, %v389
        %v397 = vunpack.c.l.b16 %v373
        %v398 = vunpack.c.l.b16 %v374
        %v399 = vunpack.c.l.b16 %v375
        %v400 = vpack.c.b16 %v398, %v397
        %v401 = vpack.c.b16 %v399, %v399
        %vm403 = vcmask 162816
        %v405 = vsel %vm403, %v390, 0
        %v408 = vsel %vm403, %v391, 0
        %v411 = vsel %vm403, %v392, 0
        %v414 = vsel %vm403, %v393, 0
        %vm416 = vcmask 1041408
        %v418 = vsel %vm416, %v401, 0
        %420 = vmatprep.subr.bf16.mxu0 0
        %421 = vmatpush1.bf16.msra.mxu0 %v400
        %422 = vmatprep.subr.bf16.mxu0 0
        %423 = vmatpush1.bf16.msra.mxu0 %v418
        %424 = vmatprep.subr.bf16.mxu0 0
        %425 = vmatpush1.bf16.msra.mxu0 0
        %426 = vmatprep.subr.bf16.mxu0 0
        %427 = vmatpush1.bf16.msra.mxu0 0
        %428 = vmatprep.subr.bf16.mxu0 0
        %429 = vmatpush1.bf16.msra.mxu0 0
        %430 = vmatprep.subr.bf16.mxu0 0
        %431 = vmatpush1.bf16.msra.mxu0 0
        %432 = vmatprep.subr.bf16.mxu0 0
        %433 = vmatpush1.bf16.msra.mxu0 0
        %434 = vmatprep.subr.bf16.mxu0 0
        %435 = vmatpush1.bf16.msra.mxu0 0
        %436 = vmatprep.subr.bf16.mxu0 0
        %437 = vmatpush1.bf16.msra.mxu0 0
        %438 = vmatprep.subr.bf16.mxu0 0
        %439 = vmatpush1.bf16.msra.mxu0 0
        %440 = vmatprep.subr.bf16.mxu0 0
        %441 = vmatpush1.bf16.msra.mxu0 0
        %442 = vmatprep.subr.bf16.mxu0 0
        %443 = vmatpush1.bf16.msra.mxu0 0
        %444 = vmatprep.subr.bf16.mxu0 0
        %445 = vmatpush1.bf16.msra.mxu0 0
        %446 = vmatprep.subr.bf16.mxu0 0
        %447 = vmatpush1.bf16.msra.mxu0 0
        %448 = vmatprep.subr.bf16.mxu0 0
        %449 = vmatpush1.bf16.msra.mxu0 0
        %450 = vmatprep.subr.bf16.mxu0 0
        %451 = vmatpush1.bf16.msra.mxu0 0
        %452 = vmatprep.mubr.bf16.mxu0 0
        %453 = vmatmul.mubr.bf16.gmra.mrb[0].mxu0 %v405
        %v454 = vpop.f32.mrb[0].mxu0
        %v455 = vadd.f32 0.0, %v454
        %v456 = vpop.f32.mrb[0].mxu0
        %v457 = vpop.f32.mrb[0].mxu0
        %v458 = vadd.f32 0.0, %v457
        %v459 = vpop.f32.mrb[0].mxu0
        %460 = vmatprep.mubr.bf16.mxu0 0
        %461 = vmatmul.mubr.bf16.gmra.mrb[0].mxu0 %v408
        %v462 = vpop.f32.mrb[0].mxu0
        %v463 = vadd.f32 0.0, %v462
        %v464 = vpop.f32.mrb[0].mxu0
        %v465 = vpop.f32.mrb[0].mxu0
        %v466 = vadd.f32 0.0, %v465
        %v467 = vpop.f32.mrb[0].mxu0
        %468 = vmatprep.mubr.bf16.mxu0 0
        %469 = vmatmul.mubr.bf16.gmra.mrb[0].mxu0 %v411
        %v470 = vpop.f32.mrb[0].mxu0
        %v471 = vadd.f32 0.0, %v470
        %v472 = vpop.f32.mrb[0].mxu0
        %v473 = vpop.f32.mrb[0].mxu0
        %v474 = vadd.f32 0.0, %v473
        %v475 = vpop.f32.mrb[0].mxu0
        %476 = vmatprep.mubr.bf16.mxu0 0
        %477 = vmatmul.mubr.bf16.gmra.mrb[0].mxu0 %v414
        %v478 = vpop.f32.mrb[0].mxu0
        %v479 = vadd.f32 0.0, %v478
        %v480 = vpop.f32.mrb[0].mxu0
        %v481 = vpop.f32.mrb[0].mxu0
        %v482 = vpop.f32.mrb[0].mxu0
        %483 = vdwg.mxu0
        %v491 = vunpack.c.l.b16 %v354
        %v492 = vunpack.c.l.b16 %v355
        %v493 = vunpack.c.l.b16 %v356
        %v494 = vunpack.c.l.b16 %v357
        %v495 = vunpack.c.l.b16 %v358
        %v496 = vunpack.c.l.b16 %v359
        %v497 = vunpack.c.l.b16 %v360
        %v498 = vpack.c.b16 %v492, %v491
        %v499 = vpack.c.b16 %v494, %v493
        %v500 = vpack.c.b16 %v496, %v495
        %v501 = vpack.c.b16 %v497, %v497
        %v505 = vunpack.c.l.b16 %v361
        %v506 = vunpack.c.l.b16 %v362
        %v507 = vunpack.c.l.b16 %v363
        %v508 = vpack.c.b16 %v506, %v505
        %v509 = vpack.c.b16 %v507, %v507
        %v512 = vsel %vm403, %v498, 0
        %v515 = vsel %vm403, %v499, 0
        %v518 = vsel %vm403, %v500, 0
        %v521 = vsel %vm403, %v501, 0
        %v524 = vsel %vm416, %v509, 0
        %526 = vmatprep.subr.bf16.mxu0 0
        %527 = vmatpush1.bf16.msra.mxu0 %v508
        %528 = vmatprep.subr.bf16.mxu0 0
        %529 = vmatpush1.bf16.msra.mxu0 %v524
        %530 = vmatprep.subr.bf16.mxu0 0
        %531 = vmatpush1.bf16.msra.mxu0 0
        %532 = vmatprep.subr.bf16.mxu0 0
        %533 = vmatpush1.bf16.msra.mxu0 0
        %534 = vmatprep.subr.bf16.mxu0 0
        %535 = vmatpush1.bf16.msra.mxu0 0
        %536 = vmatprep.subr.bf16.mxu0 0
        %537 = vmatpush1.bf16.msra.mxu0 0
        %538 = vmatprep.subr.bf16.mxu0 0
        %539 = vmatpush1.bf16.msra.mxu0 0
        %540 = vmatprep.subr.bf16.mxu0 0
        %541 = vmatpush1.bf16.msra.mxu0 0
        %542 = vmatprep.subr.bf16.mxu0 0
        %543 = vmatpush1.bf16.msra.mxu0 0
        %544 = vmatprep.subr.bf16.mxu0 0
        %545 = vmatpush1.bf16.msra.mxu0 0
        %546 = vmatprep.subr.bf16.mxu0 0
        %547 = vmatpush1.bf16.msra.mxu0 0
        %548 = vmatprep.subr.bf16.mxu0 0
        %549 = vmatpush1.bf16.msra.mxu0 0
        %550 = vmatprep.subr.bf16.mxu0 0
        %551 = vmatpush1.bf16.msra.mxu0 0
        %552 = vmatprep.subr.bf16.mxu0 0
        %553 = vmatpush1.bf16.msra.mxu0 0
        %554 = vmatprep.subr.bf16.mxu0 0
        %555 = vmatpush1.bf16.msra.mxu0 0
        %556 = vmatprep.subr.bf16.mxu0 0
        %557 = vmatpush1.bf16.msra.mxu0 0
        %558 = vmatprep.mubr.bf16.mxu0 0
        %559 = vmatmul.mubr.bf16.gmra.mrb[0].mxu0 %v512
        %v560 = vpop.f32.mrb[0].mxu0
        %v561 = vadd.f32 %v455, %v560
        %v562 = vpop.f32.mrb[0].mxu0
        %v563 = vpop.f32.mrb[0].mxu0
        %v564 = vadd.f32 %v458, %v563
        %v565 = vpop.f32.mrb[0].mxu0
        %566 = vmatprep.mubr.bf16.mxu0 0
        %567 = vmatmul.mubr.bf16.gmra.mrb[0].mxu0 %v515
        %v568 = vpop.f32.mrb[0].mxu0
        %v569 = vadd.f32 %v463, %v568
        %v570 = vpop.f32.mrb[0].mxu0
        %v571 = vpop.f32.mrb[0].mxu0
        %v572 = vadd.f32 %v466, %v571
        %v573 = vpop.f32.mrb[0].mxu0
        %574 = vmatprep.mubr.bf16.mxu0 0
        %575 = vmatmul.mubr.bf16.gmra.mrb[0].mxu0 %v518
        %v576 = vpop.f32.mrb[0].mxu0
        %v577 = vadd.f32 %v471, %v576
        %v578 = vpop.f32.mrb[0].mxu0
        %v579 = vpop.f32.mrb[0].mxu0
        %v580 = vadd.f32 %v474, %v579
        %v581 = vpop.f32.mrb[0].mxu0
        %582 = vmatprep.mubr.bf16.mxu0 0
        %583 = vmatmul.mubr.bf16.gmra.mrb[0].mxu0 %v521
        %v584 = vpop.f32.mrb[0].mxu0
        %v585 = vadd.f32 %v479, %v584
        %v586 = vpop.f32.mrb[0].mxu0
        %v587 = vpop.f32.mrb[0].mxu0
        %v588 = vpop.f32.mrb[0].mxu0
        %589 = vdwg.mxu0
        %v590 = vld [vmem:[%s327] sm:$0xf]
        %v591 = vld [vmem:[%s327 + $0x4] sm:$0xf]
        %v592 = vld [vmem:[%s327 + $0x8] sm:$0xf]
        %v593 = vld [vmem:[%s327 + $0xc] sm:$0xf]
        %v594 = vld [vmem:[%s327 + $0x10] sm:$0xf]
        %v595 = vld [vmem:[%s327 + $0x14] sm:$0xf]
        %v596 = vld [vmem:[%s327 + $0x18] sm:$0xf]
        %v597 = vld [vmem:[%s327 + $0x1c] sm:$0x1]
        %s598 = scalar_lea.vmem %s1, 24
        %v599 = vld [vmem:[%s598] sm:$0xf]
        %v600 = vld [vmem:[%s598 + $0x4] sm:$0xf]
        %v601 = vld [vmem:[%s598 + $0x8] sm:$0x3]
        %v610 = vunpack.c.l.b16 %v590
        %v611 = vunpack.c.l.b16 %v591
        %v612 = vunpack.c.l.b16 %v592
        %v613 = vunpack.c.l.b16 %v593
        %v614 = vunpack.c.l.b16 %v594
        %v615 = vunpack.c.l.b16 %v595
        %v616 = vunpack.c.l.b16 %v596
        %v617 = vunpack.c.l.b16 %v597
        %v618 = vpack.c.b16 %v611, %v610
        %v619 = vpack.c.b16 %v613, %v612
        %v620 = vpack.c.b16 %v615, %v614
        %v621 = vpack.c.b16 %v617, %v616
        %vm622 = vsmask.f32 7424
        %v624 = vshrl.u32 %v618, 16
        %v626 = vshll.u32 %v618, 16
        %v628 = vrot.slane %v626, 1
        %v629 = vor.u32 %v624, %v628
        %v631 = vshll.u32 %v619, 16
        %v633 = vrot.slane %v631, 1
        %v634 = vsel %vm622, %v629, %v633
        %v635 = vshrl.u32 %v619, 16
        %v637 = vor.u32 %v635, %v633
        %v639 = vshll.u32 %v620, 16
        %v641 = vrot.slane %v639, 1
        %v642 = vsel %vm622, %v637, %v641
        %v643 = vshrl.u32 %v620, 16
        %v645 = vor.u32 %v643, %v641
        %v647 = vshll.u32 %v621, 16
        %v649 = vrot.slane %v647, 1
        %v650 = vsel %vm622, %v645, %v649
        %v651 = vshrl.u32 %v621, 16
        %v653 = vor.u32 %v651, %v649
        %v657 = vunpack.c.l.b16 %v599
        %v658 = vunpack.c.l.b16 %v600
        %v659 = vunpack.c.l.b16 %v601
        %v660 = vpack.c.b16 %v658, %v657
        %v661 = vpack.c.b16 %v659, %v659
        %v664 = vsel %vm403, %v634, 0
        %v667 = vsel %vm403, %v642, 0
        %v670 = vsel %vm403, %v650, 0
        %v673 = vsel %vm403, %v653, 0
        %v676 = vsel %vm416, %v661, 0
        %678 = vmatprep.subr.bf16.mxu0 0
        %679 = vmatpush1.bf16.msra.mxu0 %v660
        %680 = vmatprep.subr.bf16.mxu0 0
        %681 = vmatpush1.bf16.msra.mxu0 %v676
        %682 = vmatprep.subr.bf16.mxu0 0
        %683 = vmatpush1.bf16.msra.mxu0 0
        %684 = vmatprep.subr.bf16.mxu0 0
        %685 = vmatpush1.bf16.msra.mxu0 0
        %686 = vmatprep.subr.bf16.mxu0 0
        %687 = vmatpush1.bf16.msra.mxu0 0
        %688 = vmatprep.subr.bf16.mxu0 0
        %689 = vmatpush1.bf16.msra.mxu0 0
        %690 = vmatprep.subr.bf16.mxu0 0
        %691 = vmatpush1.bf16.msra.mxu0 0
        %692 = vmatprep.subr.bf16.mxu0 0
        %693 = vmatpush1.bf16.msra.mxu0 0
        %694 = vmatprep.subr.bf16.mxu0 0
        %695 = vmatpush1.bf16.msra.mxu0 0
        %696 = vmatprep.subr.bf16.mxu0 0
        %697 = vmatpush1.bf16.msra.mxu0 0
        %698 = vmatprep.subr.bf16.mxu0 0
        %699 = vmatpush1.bf16.msra.mxu0 0
        %700 = vmatprep.subr.bf16.mxu0 0
        %701 = vmatpush1.bf16.msra.mxu0 0
        %702 = vmatprep.subr.bf16.mxu0 0
        %703 = vmatpush1.bf16.msra.mxu0 0
        %704 = vmatprep.subr.bf16.mxu0 0
        %705 = vmatpush1.bf16.msra.mxu0 0
        %706 = vmatprep.subr.bf16.mxu0 0
        %707 = vmatpush1.bf16.msra.mxu0 0
        %708 = vmatprep.subr.bf16.mxu0 0
        %709 = vmatpush1.bf16.msra.mxu0 0
        %710 = vmatprep.mubr.bf16.mxu0 0
        %711 = vmatmul.mubr.bf16.gmra.mrb[0].mxu0 %v664
        %v712 = vpop.f32.mrb[0].mxu0
        %v713 = vadd.f32 0.0, %v712
        %v714 = vpop.f32.mrb[0].mxu0
        %v715 = vpop.f32.mrb[0].mxu0
        %v716 = vadd.f32 0.0, %v715
        %v717 = vpop.f32.mrb[0].mxu0
        %718 = vmatprep.mubr.bf16.mxu0 0
        %719 = vmatmul.mubr.bf16.gmra.mrb[0].mxu0 %v667
        %v720 = vpop.f32.mrb[0].mxu0
        %v721 = vadd.f32 0.0, %v720
        %v722 = vpop.f32.mrb[0].mxu0
        %v723 = vpop.f32.mrb[0].mxu0
        %v724 = vadd.f32 0.0, %v723
        %v725 = vpop.f32.mrb[0].mxu0
        %726 = vmatprep.mubr.bf16.mxu0 0
        %727 = vmatmul.mubr.bf16.gmra.mrb[0].mxu0 %v670
        %v728 = vpop.f32.mrb[0].mxu0
        %v729 = vadd.f32 0.0, %v728
        %v730 = vpop.f32.mrb[0].mxu0
        %v731 = vpop.f32.mrb[0].mxu0
        %v732 = vadd.f32 0.0, %v731
        %v733 = vpop.f32.mrb[0].mxu0
        %734 = vmatprep.mubr.bf16.mxu0 0
        %735 = vmatmul.mubr.bf16.gmra.mrb[0].mxu0 %v673
        %v736 = vpop.f32.mrb[0].mxu0
        %v737 = vadd.f32 0.0, %v736
        %v738 = vpop.f32.mrb[0].mxu0
        %v739 = vpop.f32.mrb[0].mxu0
        %v740 = vpop.f32.mrb[0].mxu0
        %741 = vdwg.mxu0
        %v742 = vadd.f32 %v561, %v713
        %v743 = vadd.f32 %v564, %v716
        %v744 = vadd.f32 %v569, %v721
        %v745 = vadd.f32 %v572, %v724
        %v746 = vadd.f32 %v577, %v729
        %v747 = vadd.f32 %v580, %v732
        %v748 = vadd.f32 %v585, %v737
        %s749 = scalar_lea.vmem %s327, 72 [#allocation2]
        %v750 = vld [vmem:[%s749] sm:$0xf]
        %v751 = vld [vmem:[%s749 + $0x4] sm:$0xf]
        %v752 = vld [vmem:[%s749 + $0x8] sm:$0xf]
        %v753 = vld [vmem:[%s749 + $0xc] sm:$0xf]
        %v754 = vld [vmem:[%s749 + $0x10] sm:$0xf]
        %v755 = vld [vmem:[%s749 + $0x14] sm:$0xf]
        %v756 = vld [vmem:[%s749 + $0x18] sm:$0xf]
        %s757 = scalar_lea.vmem %s1, 36
        %v758 = vld [vmem:[%s757] sm:$0xf]
        %v759 = vld [vmem:[%s757 + $0x4] sm:$0xf]
        %v760 = vld [vmem:[%s757 + $0x8] sm:$0x3]
        %v768 = vunpack.c.l.b16 %v750
        %v769 = vunpack.c.l.b16 %v751
        %v770 = vunpack.c.l.b16 %v752
        %v771 = vunpack.c.l.b16 %v753
        %v772 = vunpack.c.l.b16 %v754
        %v773 = vunpack.c.l.b16 %v755
        %v774 = vunpack.c.l.b16 %v756
        %v775 = vpack.c.b16 %v769, %v768
        %v776 = vpack.c.b16 %v771, %v770
        %v777 = vpack.c.b16 %v773, %v772
        %v778 = vpack.c.b16 %v774, %v774
        %v782 = vunpack.c.l.b16 %v758
        %v783 = vunpack.c.l.b16 %v759
        %v784 = vunpack.c.l.b16 %v760
        %v785 = vpack.c.b16 %v783, %v782
        %v786 = vpack.c.b16 %v784, %v784
        %v789 = vsel %vm403, %v775, 0
        %v792 = vsel %vm403, %v776, 0
        %v795 = vsel %vm403, %v777, 0
        %v798 = vsel %vm403, %v778, 0
        %v801 = vsel %vm416, %v786, 0
        %803 = vmatprep.subr.bf16.mxu0 0
        %804 = vmatpush1.bf16.msra.mxu0 %v785
        %805 = vmatprep.subr.bf16.mxu0 0
        %806 = vmatpush1.bf16.msra.mxu0 %v801
        %807 = vmatprep.subr.bf16.mxu0 0
        %808 = vmatpush1.bf16.msra.mxu0 0
        %809 = vmatprep.subr.bf16.mxu0 0
        %810 = vmatpush1.bf16.msra.mxu0 0
        %811 = vmatprep.subr.bf16.mxu0 0
        %812 = vmatpush1.bf16.msra.mxu0 0
        %813 = vmatprep.subr.bf16.mxu0 0
        %814 = vmatpush1.bf16.msra.mxu0 0
        %815 = vmatprep.subr.bf16.mxu0 0
        %816 = vmatpush1.bf16.msra.mxu0 0
        %817 = vmatprep.subr.bf16.mxu0 0
        %818 = vmatpush1.bf16.msra.mxu0 0
        %819 = vmatprep.subr.bf16.mxu0 0
        %820 = vmatpush1.bf16.msra.mxu0 0
        %821 = vmatprep.subr.bf16.mxu0 0
        %822 = vmatpush1.bf16.msra.mxu0 0
        %823 = vmatprep.subr.bf16.mxu0 0
        %824 = vmatpush1.bf16.msra.mxu0 0
        %825 = vmatprep.subr.bf16.mxu0 0
        %826 = vmatpush1.bf16.msra.mxu0 0
        %827 = vmatprep.subr.bf16.mxu0 0
        %828 = vmatpush1.bf16.msra.mxu0 0
        %829 = vmatprep.subr.bf16.mxu0 0
        %830 = vmatpush1.bf16.msra.mxu0 0
        %831 = vmatprep.subr.bf16.mxu0 0
        %832 = vmatpush1.bf16.msra.mxu0 0
        %833 = vmatprep.subr.bf16.mxu0 0
        %834 = vmatpush1.bf16.msra.mxu0 0
        %835 = vmatprep.mubr.bf16.mxu0 0
        %836 = vmatmul.mubr.bf16.gmra.mrb[0].mxu0 %v789
        %v837 = vpop.f32.mrb[0].mxu0
        %v838 = vadd.f32 0.0, %v837
        %v839 = vpop.f32.mrb[0].mxu0
        %v840 = vpop.f32.mrb[0].mxu0
        %v841 = vadd.f32 0.0, %v840
        %v842 = vpop.f32.mrb[0].mxu0
        %843 = vmatprep.mubr.bf16.mxu0 0
        %844 = vmatmul.mubr.bf16.gmra.mrb[0].mxu0 %v792
        %v845 = vpop.f32.mrb[0].mxu0
        %v846 = vadd.f32 0.0, %v845
        %v847 = vpop.f32.mrb[0].mxu0
        %v848 = vpop.f32.mrb[0].mxu0
        %v849 = vadd.f32 0.0, %v848
        %v850 = vpop.f32.mrb[0].mxu0
        %851 = vmatprep.mubr.bf16.mxu0 0
        %852 = vmatmul.mubr.bf16.gmra.mrb[0].mxu0 %v795
        %v853 = vpop.f32.mrb[0].mxu0
        %v854 = vadd.f32 0.0, %v853
        %v855 = vpop.f32.mrb[0].mxu0
        %v856 = vpop.f32.mrb[0].mxu0
        %v857 = vadd.f32 0.0, %v856
        %v858 = vpop.f32.mrb[0].mxu0
        %859 = vmatprep.mubr.bf16.mxu0 0
        %860 = vmatmul.mubr.bf16.gmra.mrb[0].mxu0 %v798
        %v861 = vpop.f32.mrb[0].mxu0
        %v862 = vadd.f32 0.0, %v861
        %v863 = vpop.f32.mrb[0].mxu0
        %v864 = vpop.f32.mrb[0].mxu0
        %v865 = vpop.f32.mrb[0].mxu0
        %866 = vdwg.mxu0
        %v867 = vadd.f32 %v742, %v838
        %v868 = vadd.f32 %v743, %v841
        %v869 = vadd.f32 %v744, %v846
        %v870 = vadd.f32 %v745, %v849
        %v871 = vadd.f32 %v746, %v854
        %v872 = vadd.f32 %v747, %v857
        %v873 = vadd.f32 %v748, %v862
        %s874 = scalar_lea.vmem %s327, 108 [#allocation2]
        %v875 = vld [vmem:[%s874] sm:$0xf]
        %v876 = vld [vmem:[%s874 + $0x4] sm:$0xf]
        %v877 = vld [vmem:[%s874 + $0x8] sm:$0xf]
        %v878 = vld [vmem:[%s874 + $0xc] sm:$0xf]
        %v879 = vld [vmem:[%s874 + $0x10] sm:$0xf]
        %v880 = vld [vmem:[%s874 + $0x14] sm:$0xf]
        %v881 = vld [vmem:[%s874 + $0x18] sm:$0xf]
        %s882 = scalar_lea.vmem %s1, 48
        %v883 = vld [vmem:[%s882] sm:$0xf]
        %v884 = vld [vmem:[%s882 + $0x4] sm:$0xf]
        %v885 = vld [vmem:[%s882 + $0x8] sm:$0x3]
        %v893 = vunpack.c.l.b16 %v875
        %v894 = vunpack.c.l.b16 %v876
        %v895 = vunpack.c.l.b16 %v877
        %v896 = vunpack.c.l.b16 %v878
        %v897 = vunpack.c.l.b16 %v879
        %v898 = vunpack.c.l.b16 %v880
        %v899 = vunpack.c.l.b16 %v881
        %v900 = vpack.c.b16 %v894, %v893
        %v901 = vpack.c.b16 %v896, %v895
        %v902 = vpack.c.b16 %v898, %v897
        %v903 = vpack.c.b16 %v899, %v899
        %v907 = vunpack.c.l.b16 %v883
        %v908 = vunpack.c.l.b16 %v884
        %v909 = vunpack.c.l.b16 %v885
        %v910 = vpack.c.b16 %v908, %v907
        %v911 = vpack.c.b16 %v909, %v909
        %v914 = vsel %vm403, %v900, 0
        %v917 = vsel %vm403, %v901, 0
        %v920 = vsel %vm403, %v902, 0
        %v923 = vsel %vm403, %v903, 0
        %v926 = vsel %vm416, %v911, 0
        %928 = vmatprep.subr.bf16.mxu0 0
        %929 = vmatpush1.bf16.msra.mxu0 %v910
        %930 = vmatprep.subr.bf16.mxu0 0
        %931 = vmatpush1.bf16.msra.mxu0 %v926
        %932 = vmatprep.subr.bf16.mxu0 0
        %933 = vmatpush1.bf16.msra.mxu0 0
        %934 = vmatprep.subr.bf16.mxu0 0
        %935 = vmatpush1.bf16.msra.mxu0 0
        %936 = vmatprep.subr.bf16.mxu0 0
        %937 = vmatpush1.bf16.msra.mxu0 0
        %938 = vmatprep.subr.bf16.mxu0 0
        %939 = vmatpush1.bf16.msra.mxu0 0
        %940 = vmatprep.subr.bf16.mxu0 0
        %941 = vmatpush1.bf16.msra.mxu0 0
        %942 = vmatprep.subr.bf16.mxu0 0
        %943 = vmatpush1.bf16.msra.mxu0 0
        %944 = vmatprep.subr.bf16.mxu0 0
        %945 = vmatpush1.bf16.msra.mxu0 0
        %946 = vmatprep.subr.bf16.mxu0 0
        %947 = vmatpush1.bf16.msra.mxu0 0
        %948 = vmatprep.subr.bf16.mxu0 0
        %949 = vmatpush1.bf16.msra.mxu0 0
        %950 = vmatprep.subr.bf16.mxu0 0
        %951 = vmatpush1.bf16.msra.mxu0 0
        %952 = vmatprep.subr.bf16.mxu0 0
        %953 = vmatpush1.bf16.msra.mxu0 0
        %954 = vmatprep.subr.bf16.mxu0 0
        %955 = vmatpush1.bf16.msra.mxu0 0
        %956 = vmatprep.subr.bf16.mxu0 0
        %957 = vmatpush1.bf16.msra.mxu0 0
        %958 = vmatprep.subr.bf16.mxu0 0
        %959 = vmatpush1.bf16.msra.mxu0 0
        %960 = vmatprep.mubr.bf16.mxu0 0
        %961 = vmatmul.mubr.bf16.gmra.mrb[0].mxu0 %v914
        %v962 = vpop.f32.mrb[0].mxu0
        %v963 = vadd.f32 0.0, %v962
        %v964 = vpop.f32.mrb[0].mxu0
        %v965 = vpop.f32.mrb[0].mxu0
        %v966 = vadd.f32 0.0, %v965
        %v967 = vpop.f32.mrb[0].mxu0
        %968 = vmatprep.mubr.bf16.mxu0 0
        %969 = vmatmul.mubr.bf16.gmra.mrb[0].mxu0 %v917
        %v970 = vpop.f32.mrb[0].mxu0
        %v971 = vadd.f32 0.0, %v970
        %v972 = vpop.f32.mrb[0].mxu0
        %v973 = vpop.f32.mrb[0].mxu0
        %v974 = vadd.f32 0.0, %v973
        %v975 = vpop.f32.mrb[0].mxu0
        %976 = vmatprep.mubr.bf16.mxu0 0
        %977 = vmatmul.mubr.bf16.gmra.mrb[0].mxu0 %v920
        %v978 = vpop.f32.mrb[0].mxu0
        %v979 = vadd.f32 0.0, %v978
        %v980 = vpop.f32.mrb[0].mxu0
        %v981 = vpop.f32.mrb[0].mxu0
        %v982 = vadd.f32 0.0, %v981
        %v983 = vpop.f32.mrb[0].mxu0
        %984 = vmatprep.mubr.bf16.mxu0 0
        %985 = vmatmul.mubr.bf16.gmra.mrb[0].mxu0 %v923
        %v986 = vpop.f32.mrb[0].mxu0
        %v987 = vadd.f32 0.0, %v986
        %v988 = vpop.f32.mrb[0].mxu0
        %v989 = vpop.f32.mrb[0].mxu0
        %v990 = vpop.f32.mrb[0].mxu0
        %991 = vdwg.mxu0
        %v992 = vadd.f32 %v867, %v963
        %v993 = vadd.f32 %v868, %v966
        %v994 = vadd.f32 %v869, %v971
        %v995 = vadd.f32 %v870, %v974
        %v996 = vadd.f32 %v871, %v979
        %v997 = vadd.f32 %v872, %v982
        %v998 = vadd.f32 %v873, %v987
        %v999 = vld [vmem:[%s749] sm:$0xf]
        %v1000 = vld [vmem:[%s749 + $0x4] sm:$0xf]
        %v1001 = vld [vmem:[%s749 + $0x8] sm:$0xf]
        %v1002 = vld [vmem:[%s749 + $0xc] sm:$0xf]
        %v1003 = vld [vmem:[%s749 + $0x10] sm:$0xf]
        %v1004 = vld [vmem:[%s749 + $0x14] sm:$0xf]
        %v1005 = vld [vmem:[%s749 + $0x18] sm:$0xf]
        %v1006 = vld [vmem:[%s749 + $0x1c] sm:$0x1]
        %s1007 = scalar_lea.vmem %s1, 60
        %v1008 = vld [vmem:[%s1007] sm:$0xf]
        %v1009 = vld [vmem:[%s1007 + $0x4] sm:$0xf]
        %v1010 = vld [vmem:[%s1007 + $0x8] sm:$0x3]
        %v1019 = vunpack.c.l.b16 %v999
        %v1020 = vunpack.c.l.b16 %v1000
        %v1021 = vunpack.c.l.b16 %v1001
        %v1022 = vunpack.c.l.b16 %v1002
        %v1023 = vunpack.c.l.b16 %v1003
        %v1024 = vunpack.c.l.b16 %v1004
        %v1025 = vunpack.c.l.b16 %v1005
        %v1026 = vunpack.c.l.b16 %v1006
        %v1027 = vpack.c.b16 %v1020, %v1019
        %v1028 = vpack.c.b16 %v1022, %v1021
        %v1029 = vpack.c.b16 %v1024, %v1023
        %v1030 = vpack.c.b16 %v1026, %v1025
        %v1032 = vshrl.u32 %v1027, 16
        %v1034 = vshll.u32 %v1027, 16
        %v1036 = vrot.slane %v1034, 1
        %v1037 = vor.u32 %v1032, %v1036
        %v1039 = vshll.u32 %v1028, 16
        %v1041 = vrot.slane %v1039, 1
        %v1042 = vsel %vm622, %v1037, %v1041
        %v1043 = vshrl.u32 %v1028, 16
        %v1045 = vor.u32 %v1043, %v1041
        %v1047 = vshll.u32 %v1029, 16
        %v1049 = vrot.slane %v1047, 1
        %v1050 = vsel %vm622, %v1045, %v1049
        %v1051 = vshrl.u32 %v1029, 16
        %v1053 = vor.u32 %v1051, %v1049
        %v1055 = vshll.u32 %v1030, 16
        %v1057 = vrot.slane %v1055, 1
        %v1058 = vsel %vm622, %v1053, %v1057
        %v1059 = vshrl.u32 %v1030, 16
        %v1061 = vor.u32 %v1059, %v1057
        %v1065 = vunpack.c.l.b16 %v1008
        %v1066 = vunpack.c.l.b16 %v1009
        %v1067 = vunpack.c.l.b16 %v1010
        %v1068 = vpack.c.b16 %v1066, %v1065
        %v1069 = vpack.c.b16 %v1067, %v1067
        %v1072 = vsel %vm403, %v1042, 0
        %v1075 = vsel %vm403, %v1050, 0
        %v1078 = vsel %vm403, %v1058, 0
        %v1081 = vsel %vm403, %v1061, 0
        %v1084 = vsel %vm416, %v1069, 0
        %1086 = vmatprep.subr.bf16.mxu0 0
        %1087 = vmatpush1.bf16.msra.mxu0 %v1068
        %1088 = vmatprep.subr.bf16.mxu0 0
        %1089 = vmatpush1.bf16.msra.mxu0 %v1084
        %1090 = vmatprep.subr.bf16.mxu0 0
        %1091 = vmatpush1.bf16.msra.mxu0 0
        %1092 = vmatprep.subr.bf16.mxu0 0
        %1093 = vmatpush1.bf16.msra.mxu0 0
        %1094 = vmatprep.subr.bf16.mxu0 0
        %1095 = vmatpush1.bf16.msra.mxu0 0
        %1096 = vmatprep.subr.bf16.mxu0 0
        %1097 = vmatpush1.bf16.msra.mxu0 0
        %1098 = vmatprep.subr.bf16.mxu0 0
        %1099 = vmatpush1.bf16.msra.mxu0 0
        %1100 = vmatprep.subr.bf16.mxu0 0
        %1101 = vmatpush1.bf16.msra.mxu0 0
        %1102 = vmatprep.subr.bf16.mxu0 0
        %1103 = vmatpush1.bf16.msra.mxu0 0
        %1104 = vmatprep.subr.bf16.mxu0 0
        %1105 = vmatpush1.bf16.msra.mxu0 0
        %1106 = vmatprep.subr.bf16.mxu0 0
        %1107 = vmatpush1.bf16.msra.mxu0 0
        %1108 = vmatprep.subr.bf16.mxu0 0
        %1109 = vmatpush1.bf16.msra.mxu0 0
        %1110 = vmatprep.subr.bf16.mxu0 0
        %1111 = vmatpush1.bf16.msra.mxu0 0
        %1112 = vmatprep.subr.bf16.mxu0 0
        %1113 = vmatpush1.bf16.msra.mxu0 0
        %1114 = vmatprep.subr.bf16.mxu0 0
        %1115 = vmatpush1.bf16.msra.mxu0 0
        %1116 = vmatprep.subr.bf16.mxu0 0
        %1117 = vmatpush1.bf16.msra.mxu0 0
        %1118 = vmatprep.mubr.bf16.mxu0 0
        %1119 = vmatmul.mubr.bf16.gmra.mrb[0].mxu0 %v1072
        %v1120 = vpop.f32.mrb[0].mxu0
        %v1121 = vadd.f32 0.0, %v1120
        %v1122 = vpop.f32.mrb[0].mxu0
        %v1123 = vpop.f32.mrb[0].mxu0
        %v1124 = vadd.f32 0.0, %v1123
        %v1125 = vpop.f32.mrb[0].mxu0
        %1126 = vmatprep.mubr.bf16.mxu0 0
        %1127 = vmatmul.mubr.bf16.gmra.mrb[0].mxu0 %v1075
        %v1128 = vpop.f32.mrb[0].mxu0
        %v1129 = vadd.f32 0.0, %v1128
        %v1130 = vpop.f32.mrb[0].mxu0
        %v1131 = vpop.f32.mrb[0].mxu0
        %v1132 = vadd.f32 0.0, %v1131
        %v1133 = vpop.f32.mrb[0].mxu0
        %1134 = vmatprep.mubr.bf16.mxu0 0
        %1135 = vmatmul.mubr.bf16.gmra.mrb[0].mxu0 %v1078
        %v1136 = vpop.f32.mrb[0].mxu0
        %v1137 = vadd.f32 0.0, %v1136
        %v1138 = vpop.f32.mrb[0].mxu0
        %v1139 = vpop.f32.mrb[0].mxu0
        %v1140 = vadd.f32 0.0, %v1139
        %v1141 = vpop.f32.mrb[0].mxu0
        %1142 = vmatprep.mubr.bf16.mxu0 0
        %1143 = vmatmul.mubr.bf16.gmra.mrb[0].mxu0 %v1081
        %v1144 = vpop.f32.mrb[0].mxu0
        %v1145 = vadd.f32 0.0, %v1144
        %v1146 = vpop.f32.mrb[0].mxu0
        %v1147 = vpop.f32.mrb[0].mxu0
        %v1148 = vpop.f32.mrb[0].mxu0
        %1149 = vdwg.mxu0
        %v1150 = vadd.f32 %v992, %v1121
        %v1151 = vadd.f32 %v993, %v1124
        %v1152 = vadd.f32 %v994, %v1129
        %v1153 = vadd.f32 %v995, %v1132
        %v1154 = vadd.f32 %v996, %v1137
        %v1155 = vadd.f32 %v997, %v1140
        %v1156 = vadd.f32 %v998, %v1145
        %v1157 = vld [vmem:[%s327 + $0x1c] sm:$0xf]
        %s1158 = scalar_lea.vmem %s1, 72
        %v1159 = vld [vmem:[%s1158] sm:$0xf]
        %v1160 = vld [vmem:[%s1158 + $0x4] sm:$0xf]
        %v1161 = vld [vmem:[%s1158 + $0x8] sm:$0x3]
        %v1163 = vunpack.c.l.b16 %v1157
        %v1164 = vpack.c.b16 %v612, %v611
        %v1165 = vpack.c.b16 %v614, %v613
        %v1166 = vpack.c.b16 %v616, %v615
        %v1167 = vpack.c.b16 %v1163, %v1163
        %v1171 = vunpack.c.l.b16 %v1159
        %v1172 = vunpack.c.l.b16 %v1160
        %v1173 = vunpack.c.l.b16 %v1161
        %v1174 = vpack.c.b16 %v1172, %v1171
        %v1175 = vpack.c.b16 %v1173, %v1173
        %v1178 = vsel %vm403, %v1164, 0
        %v1181 = vsel %vm403, %v1165, 0
        %v1184 = vsel %vm403, %v1166, 0
        %v1187 = vsel %vm403, %v1167, 0
        %v1190 = vsel %vm416, %v1175, 0
        %1192 = vmatprep.subr.bf16.mxu0 0
        %1193 = vmatpush1.bf16.msra.mxu0 %v1174
        %1194 = vmatprep.subr.bf16.mxu0 0
        %1195 = vmatpush1.bf16.msra.mxu0 %v1190
        %1196 = vmatprep.subr.bf16.mxu0 0
        %1197 = vmatpush1.bf16.msra.mxu0 0
        %1198 = vmatprep.subr.bf16.mxu0 0
        %1199 = vmatpush1.bf16.msra.mxu0 0
        %1200 = vmatprep.subr.bf16.mxu0 0
        %1201 = vmatpush1.bf16.msra.mxu0 0
        %1202 = vmatprep.subr.bf16.mxu0 0
        %1203 = vmatpush1.bf16.msra.mxu0 0
        %1204 = vmatprep.subr.bf16.mxu0 0
        %1205 = vmatpush1.bf16.msra.mxu0 0
        %1206 = vmatprep.subr.bf16.mxu0 0
        %1207 = vmatpush1.bf16.msra.mxu0 0
        %1208 = vmatprep.subr.bf16.mxu0 0
        %1209 = vmatpush1.bf16.msra.mxu0 0
        %1210 = vmatprep.subr.bf16.mxu0 0
        %1211 = vmatpush1.bf16.msra.mxu0 0
        %1212 = vmatprep.subr.bf16.mxu0 0
        %1213 = vmatpush1.bf16.msra.mxu0 0
        %1214 = vmatprep.subr.bf16.mxu0 0
        %1215 = vmatpush1.bf16.msra.mxu0 0
        %1216 = vmatprep.subr.bf16.mxu0 0
        %1217 = vmatpush1.bf16.msra.mxu0 0
        %1218 = vmatprep.subr.bf16.mxu0 0
        %1219 = vmatpush1.bf16.msra.mxu0 0
        %1220 = vmatprep.subr.bf16.mxu0 0
        %1221 = vmatpush1.bf16.msra.mxu0 0
        %1222 = vmatprep.subr.bf16.mxu0 0
        %1223 = vmatpush1.bf16.msra.mxu0 0
        %1224 = vmatprep.mubr.bf16.mxu0 0
        %1225 = vmatmul.mubr.bf16.gmra.mrb[0].mxu0 %v1178
        %v1226 = vpop.f32.mrb[0].mxu0
        %v1227 = vadd.f32 0.0, %v1226
        %v1228 = vpop.f32.mrb[0].mxu0
        %v1229 = vpop.f32.mrb[0].mxu0
        %v1230 = vadd.f32 0.0, %v1229
        %v1231 = vpop.f32.mrb[0].mxu0
        %1232 = vmatprep.mubr.bf16.mxu0 0
        %1233 = vmatmul.mubr.bf16.gmra.mrb[0].mxu0 %v1181
        %v1234 = vpop.f32.mrb[0].mxu0
        %v1235 = vadd.f32 0.0, %v1234
        %v1236 = vpop.f32.mrb[0].mxu0
        %v1237 = vpop.f32.mrb[0].mxu0
        %v1238 = vadd.f32 0.0, %v1237
        %v1239 = vpop.f32.mrb[0].mxu0
        %1240 = vmatprep.mubr.bf16.mxu0 0
        %1241 = vmatmul.mubr.bf16.gmra.mrb[0].mxu0 %v1184
        %v1242 = vpop.f32.mrb[0].mxu0
        %v1243 = vadd.f32 0.0, %v1242
        %v1244 = vpop.f32.mrb[0].mxu0
        %v1245 = vpop.f32.mrb[0].mxu0
        %v1246 = vadd.f32 0.0, %v1245
        %v1247 = vpop.f32.mrb[0].mxu0
        %1248 = vmatprep.mubr.bf16.mxu0 0
        %1249 = vmatmul.mubr.bf16.gmra.mrb[0].mxu0 %v1187
        %v1250 = vpop.f32.mrb[0].mxu0
        %v1251 = vadd.f32 0.0, %v1250
        %v1252 = vpop.f32.mrb[0].mxu0
        %v1253 = vpop.f32.mrb[0].mxu0
        %v1254 = vpop.f32.mrb[0].mxu0
        %1255 = vdwg.mxu0
        %v1256 = vadd.f32 %v1150, %v1227
        %v1257 = vadd.f32 %v1151, %v1230
        %v1258 = vadd.f32 %v1152, %v1235
        %v1259 = vadd.f32 %v1153, %v1238
        %v1260 = vadd.f32 %v1154, %v1243
        %v1261 = vadd.f32 %v1155, %v1246
        %v1262 = vadd.f32 %v1156, %v1251
        %v1263 = vld [vmem:[%s364 + $0x4] sm:$0xf]
        %v1264 = vld [vmem:[%s364 + $0x8] sm:$0xf]
        %v1265 = vld [vmem:[%s364 + $0xc] sm:$0xf]
        %v1266 = vld [vmem:[%s364 + $0x10] sm:$0xf]
        %v1267 = vld [vmem:[%s364 + $0x14] sm:$0xf]
        %v1268 = vld [vmem:[%s364 + $0x18] sm:$0xf]
        %v1269 = vld [vmem:[%s364 + $0x1c] sm:$0xf]
        %s1270 = scalar_lea.vmem %s1, 84
        %v1271 = vld [vmem:[%s1270] sm:$0xf]
        %v1272 = vld [vmem:[%s1270 + $0x4] sm:$0xf]
        %v1273 = vld [vmem:[%s1270 + $0x8] sm:$0x3]
        %v1281 = vunpack.c.l.b16 %v1263
        %v1282 = vunpack.c.l.b16 %v1264
        %v1283 = vunpack.c.l.b16 %v1265
        %v1284 = vunpack.c.l.b16 %v1266
        %v1285 = vunpack.c.l.b16 %v1267
        %v1286 = vunpack.c.l.b16 %v1268
        %v1287 = vunpack.c.l.b16 %v1269
        %v1288 = vpack.c.b16 %v1282, %v1281
        %v1289 = vpack.c.b16 %v1284, %v1283
        %v1290 = vpack.c.b16 %v1286, %v1285
        %v1291 = vpack.c.b16 %v1287, %v1287
        %v1295 = vunpack.c.l.b16 %v1271
        %v1296 = vunpack.c.l.b16 %v1272
        %v1297 = vunpack.c.l.b16 %v1273
        %v1298 = vpack.c.b16 %v1296, %v1295
        %v1299 = vpack.c.b16 %v1297, %v1297
        %v1302 = vsel %vm403, %v1288, 0
        %v1305 = vsel %vm403, %v1289, 0
        %v1308 = vsel %vm403, %v1290, 0
        %v1311 = vsel %vm403, %v1291, 0
        %v1314 = vsel %vm416, %v1299, 0
        %1316 = vmatprep.subr.bf16.mxu0 0
        %1317 = vmatpush1.bf16.msra.mxu0 %v1298
        %1318 = vmatprep.subr.bf16.mxu0 0
        %1319 = vmatpush1.bf16.msra.mxu0 %v1314
        %1320 = vmatprep.subr.bf16.mxu0 0
        %1321 = vmatpush1.bf16.msra.mxu0 0
        %1322 = vmatprep.subr.bf16.mxu0 0
        %1323 = vmatpush1.bf16.msra.mxu0 0
        %1324 = vmatprep.subr.bf16.mxu0 0
        %1325 = vmatpush1.bf16.msra.mxu0 0
        %1326 = vmatprep.subr.bf16.mxu0 0
        %1327 = vmatpush1.bf16.msra.mxu0 0
        %1328 = vmatprep.subr.bf16.mxu0 0
        %1329 = vmatpush1.bf16.msra.mxu0 0
        %1330 = vmatprep.subr.bf16.mxu0 0
        %1331 = vmatpush1.bf16.msra.mxu0 0
        %1332 = vmatprep.subr.bf16.mxu0 0
        %1333 = vmatpush1.bf16.msra.mxu0 0
        %1334 = vmatprep.subr.bf16.mxu0 0
        %1335 = vmatpush1.bf16.msra.mxu0 0
        %1336 = vmatprep.subr.bf16.mxu0 0
        %1337 = vmatpush1.bf16.msra.mxu0 0
        %1338 = vmatprep.subr.bf16.mxu0 0
        %1339 = vmatpush1.bf16.msra.mxu0 0
        %1340 = vmatprep.subr.bf16.mxu0 0
        %1341 = vmatpush1.bf16.msra.mxu0 0
        %1342 = vmatprep.subr.bf16.mxu0 0
        %1343 = vmatpush1.bf16.msra.mxu0 0
        %1344 = vmatprep.subr.bf16.mxu0 0
        %1345 = vmatpush1.bf16.msra.mxu0 0
        %1346 = vmatprep.subr.bf16.mxu0 0
        %1347 = vmatpush1.bf16.msra.mxu0 0
        %1348 = vmatprep.mubr.bf16.mxu0 0
        %1349 = vmatmul.mubr.bf16.gmra.mrb[0].mxu0 %v1302
        %v1350 = vpop.f32.mrb[0].mxu0
        %v1351 = vadd.f32 0.0, %v1350
        %v1352 = vpop.f32.mrb[0].mxu0
        %v1353 = vpop.f32.mrb[0].mxu0
        %v1354 = vadd.f32 0.0, %v1353
        %v1355 = vpop.f32.mrb[0].mxu0
        %1356 = vmatprep.mubr.bf16.mxu0 0
        %1357 = vmatmul.mubr.bf16.gmra.mrb[0].mxu0 %v1305
        %v1358 = vpop.f32.mrb[0].mxu0
        %v1359 = vadd.f32 0.0, %v1358
        %v1360 = vpop.f32.mrb[0].mxu0
        %v1361 = vpop.f32.mrb[0].mxu0
        %v1362 = vadd.f32 0.0, %v1361
        %v1363 = vpop.f32.mrb[0].mxu0
        %1364 = vmatprep.mubr.bf16.mxu0 0
        %1365 = vmatmul.mubr.bf16.gmra.mrb[0].mxu0 %v1308
        %v1366 = vpop.f32.mrb[0].mxu0
        %v1367 = vadd.f32 0.0, %v1366
        %v1368 = vpop.f32.mrb[0].mxu0
        %v1369 = vpop.f32.mrb[0].mxu0
        %v1370 = vadd.f32 0.0, %v1369
        %v1371 = vpop.f32.mrb[0].mxu0
        %1372 = vmatprep.mubr.bf16.mxu0 0
        %1373 = vmatmul.mubr.bf16.gmra.mrb[0].mxu0 %v1311
        %v1374 = vpop.f32.mrb[0].mxu0
        %v1375 = vadd.f32 0.0, %v1374
        %v1376 = vpop.f32.mrb[0].mxu0
        %v1377 = vpop.f32.mrb[0].mxu0
        %v1378 = vpop.f32.mrb[0].mxu0
        %1379 = vdwg.mxu0
        %v1380 = vadd.f32 %v1256, %v1351
        %v1381 = vadd.f32 %v1257, %v1354
        %v1382 = vadd.f32 %v1258, %v1359
        %v1383 = vadd.f32 %v1259, %v1362
        %v1384 = vadd.f32 %v1260, %v1367
        %v1385 = vadd.f32 %v1261, %v1370
        %v1386 = vadd.f32 %v1262, %v1375
        %v1387 = vld [vmem:[%s327 + $0x4] sm:$0xf]
        %v1388 = vld [vmem:[%s327 + $0x8] sm:$0xf]
        %v1389 = vld [vmem:[%s327 + $0xc] sm:$0xf]
        %v1390 = vld [vmem:[%s327 + $0x10] sm:$0xf]
        %v1391 = vld [vmem:[%s327 + $0x14] sm:$0xf]
        %v1392 = vld [vmem:[%s327 + $0x18] sm:$0xf]
        %v1393 = vld [vmem:[%s327 + $0x1c] sm:$0xf]
        %v1394 = vld [vmem:[%s327 + $0x20] sm:$0x1]
        %s1395 = scalar_lea.vmem %s1, 96
        %v1396 = vld [vmem:[%s1395] sm:$0xf]
        %v1397 = vld [vmem:[%s1395 + $0x4] sm:$0xf]
        %v1398 = vld [vmem:[%s1395 + $0x8] sm:$0x3]
        %v1407 = vunpack.c.l.b16 %v1387
        %v1408 = vunpack.c.l.b16 %v1388
        %v1409 = vunpack.c.l.b16 %v1389
        %v1410 = vunpack.c.l.b16 %v1390
        %v1411 = vunpack.c.l.b16 %v1391
        %v1412 = vunpack.c.l.b16 %v1392
        %v1413 = vunpack.c.l.b16 %v1393
        %v1414 = vunpack.c.l.b16 %v1394
        %v1415 = vpack.c.b16 %v1408, %v1407
        %v1416 = vpack.c.b16 %v1410, %v1409
        %v1417 = vpack.c.b16 %v1412, %v1411
        %v1418 = vpack.c.b16 %v1414, %v1413
        %v1420 = vshrl.u32 %v1415, 16
        %v1422 = vshll.u32 %v1415, 16
        %v1424 = vrot.slane %v1422, 1
        %v1425 = vor.u32 %v1420, %v1424
        %v1427 = vshll.u32 %v1416, 16
        %v1429 = vrot.slane %v1427, 1
        %v1430 = vsel %vm622, %v1425, %v1429
        %v1431 = vshrl.u32 %v1416, 16
        %v1433 = vor.u32 %v1431, %v1429
        %v1435 = vshll.u32 %v1417, 16
        %v1437 = vrot.slane %v1435, 1
        %v1438 = vsel %vm622, %v1433, %v1437
        %v1439 = vshrl.u32 %v1417, 16
        %v1441 = vor.u32 %v1439, %v1437
        %v1443 = vshll.u32 %v1418, 16
        %v1445 = vrot.slane %v1443, 1
        %v1446 = vsel %vm622, %v1441, %v1445
        %v1447 = vshrl.u32 %v1418, 16
        %v1449 = vor.u32 %v1447, %v1445
        %v1453 = vunpack.c.l.b16 %v1396
        %v1454 = vunpack.c.l.b16 %v1397
        %v1455 = vunpack.c.l.b16 %v1398
        %v1456 = vpack.c.b16 %v1454, %v1453
        %v1457 = vpack.c.b16 %v1455, %v1455
        %v1460 = vsel %vm403, %v1430, 0
        %v1463 = vsel %vm403, %v1438, 0
        %v1466 = vsel %vm403, %v1446, 0
        %v1469 = vsel %vm403, %v1449, 0
        %v1472 = vsel %vm416, %v1457, 0
        %1474 = vmatprep.subr.bf16.mxu0 0
        %1475 = vmatpush1.bf16.msra.mxu0 %v1456
        %1476 = vmatprep.subr.bf16.mxu0 0
        %1477 = vmatpush1.bf16.msra.mxu0 %v1472
        %1478 = vmatprep.subr.bf16.mxu0 0
        %1479 = vmatpush1.bf16.msra.mxu0 0
        %1480 = vmatprep.subr.bf16.mxu0 0
        %1481 = vmatpush1.bf16.msra.mxu0 0
        %1482 = vmatprep.subr.bf16.mxu0 0
        %1483 = vmatpush1.bf16.msra.mxu0 0
        %1484 = vmatprep.subr.bf16.mxu0 0
        %1485 = vmatpush1.bf16.msra.mxu0 0
        %1486 = vmatprep.subr.bf16.mxu0 0
        %1487 = vmatpush1.bf16.msra.mxu0 0
        %1488 = vmatprep.subr.bf16.mxu0 0
        %1489 = vmatpush1.bf16.msra.mxu0 0
        %1490 = vmatprep.subr.bf16.mxu0 0
        %1491 = vmatpush1.bf16.msra.mxu0 0
        %1492 = vmatprep.subr.bf16.mxu0 0
        %1493 = vmatpush1.bf16.msra.mxu0 0
        %1494 = vmatprep.subr.bf16.mxu0 0
        %1495 = vmatpush1.bf16.msra.mxu0 0
        %1496 = vmatprep.subr.bf16.mxu0 0
        %1497 = vmatpush1.bf16.msra.mxu0 0
        %1498 = vmatprep.subr.bf16.mxu0 0
        %1499 = vmatpush1.bf16.msra.mxu0 0
        %1500 = vmatprep.subr.bf16.mxu0 0
        %1501 = vmatpush1.bf16.msra.mxu0 0
        %1502 = vmatprep.subr.bf16.mxu0 0
        %1503 = vmatpush1.bf16.msra.mxu0 0
        %1504 = vmatprep.subr.bf16.mxu0 0
        %1505 = vmatpush1.bf16.msra.mxu0 0
        %1506 = vmatprep.mubr.bf16.mxu0 0
        %1507 = vmatmul.mubr.bf16.gmra.mrb[0].mxu0 %v1460
        %v1508 = vpop.f32.mrb[0].mxu0
        %v1509 = vadd.f32 0.0, %v1508
        %v1510 = vpop.f32.mrb[0].mxu0
        %v1511 = vpop.f32.mrb[0].mxu0
        %v1512 = vadd.f32 0.0, %v1511
        %v1513 = vpop.f32.mrb[0].mxu0
        %1514 = vmatprep.mubr.bf16.mxu0 0
        %1515 = vmatmul.mubr.bf16.gmra.mrb[0].mxu0 %v1463
        %v1516 = vpop.f32.mrb[0].mxu0
        %v1517 = vadd.f32 0.0, %v1516
        %v1518 = vpop.f32.mrb[0].mxu0
        %v1519 = vpop.f32.mrb[0].mxu0
        %v1520 = vadd.f32 0.0, %v1519
        %v1521 = vpop.f32.mrb[0].mxu0
        %1522 = vmatprep.mubr.bf16.mxu0 0
        %1523 = vmatmul.mubr.bf16.gmra.mrb[0].mxu0 %v1466
        %v1524 = vpop.f32.mrb[0].mxu0
        %v1525 = vadd.f32 0.0, %v1524
        %v1526 = vpop.f32.mrb[0].mxu0
        %v1527 = vpop.f32.mrb[0].mxu0
        %v1528 = vadd.f32 0.0, %v1527
        %v1529 = vpop.f32.mrb[0].mxu0
        %1530 = vmatprep.mubr.bf16.mxu0 0
        %1531 = vmatmul.mubr.bf16.gmra.mrb[0].mxu0 %v1469
        %v1532 = vpop.f32.mrb[0].mxu0
        %v1533 = vadd.f32 0.0, %v1532
        %v1534 = vpop.f32.mrb[0].mxu0
        %v1535 = vpop.f32.mrb[0].mxu0
        %v1536 = vpop.f32.mrb[0].mxu0
        %1537 = vdwg.mxu0
        %v1538 = vadd.f32 %v1380, %v1509
        %v1539 = vadd.f32 %v1381, %v1512
        %v1540 = vadd.f32 %v1382, %v1517
        %v1541 = vadd.f32 %v1383, %v1520
        %v1542 = vadd.f32 %v1384, %v1525
        %v1543 = vadd.f32 %v1385, %v1528
        %v1544 = vadd.f32 %v1386, %v1533
        %v1545 = vld [vmem:[%s2] sm:$0x1]
        %v1547 = vlaneseq
        %v1548 = vshrl.u32 %v1547, 7
        %v1549 = vsub.s32 0, %v1548
        %v1550 = vrot.slane %v1545, %v1549
        %v1552 = vadd.f32 %v1538, %v1550
        %v1553 = vadd.f32 %v1539, %v1550
        %v1554 = vadd.f32 %v1540, %v1550
        %v1555 = vadd.f32 %v1541, %v1550
        %v1556 = vadd.f32 %v1542, %v1550
        %v1557 = vadd.f32 %v1543, %v1550
        %v1558 = vadd.f32 %v1544, %v1550
        %vm1559 = vcmask 326656
        %1560 = vst.msk [vmem:[%s352] sm:$0xff] %vm1559, %v1552
        %1561 = vst.msk [vmem:[%s352 + $0x8] sm:$0xff] %vm1559, %v1553
        %1562 = vst.msk [vmem:[%s352 + $0x10] sm:$0xff] %vm1559, %v1554
        %1563 = vst.msk [vmem:[%s352 + $0x18] sm:$0xff] %vm1559, %v1555
        %1564 = vst.msk [vmem:[%s352 + $0x20] sm:$0xff] %vm1559, %v1556
        %1565 = vst.msk [vmem:[%s352 + $0x28] sm:$0xff] %vm1559, %v1557
        %1566 = vst.msk [vmem:[%s352 + $0x30] sm:$0xff] %vm1559, %v1558
        %p1567 = scmp.lt.s32.totalorder %s14, 1
        %s1568 = scalar_select %p1567, %s14, 1
        %s1569 = smul.addr %s1568, 7
        %s1570 = smul.addr %s1569, 8
        %s1571 = scalar_lea.vmem %s3, %s1570
        // Predicated region
        $region74: #{_lambda_.1} parent=68 // pred_check
          %p1572 = pneg %p100
        $region75: #{_lambda_.1} parent=68 // pred_check_branch
          %1574 = sbr.rel (%p1572) target = $region77
        $region76: #{_lambda_.1} parent=68 // pred_region
          _
        $region77: #{_lambda_.1} parent=68 // pred_fallthru
          _
      $region69: #{_lambda_.1} parent=5 // pred_fallthru
        _
      %p1575 = scmp.le.s32.totalorder 2, %s9
      // Predicated region
      $region78: #{_lambda_.1} parent=5 // pred_check
        %p1576 = pneg %p1575
      $region79: #{_lambda_.1} parent=5 // pred_check_branch
        %1578 = sbr.rel (%p1576) target = $region81
      $region80: #{_lambda_.1} parent=5 // pred_region
        %s1579 = ssub.s32 %s9, 2
        // Predicated region
        $region82: #{_lambda_.1} parent=80 // pred_check
          %p1580 = pneg %p106
        $region83: #{_lambda_.1} parent=80 // pred_check_branch
          %1582 = sbr.rel (%p1580) target = $region85
        $region84: #{_lambda_.1} parent=80 // pred_region
          %p1583 = scmp.lt.s32.totalorder %s15, 1
          %s1584 = scalar_select %p1583, %s15, 1
          %s1585 = smul.addr %s1584, 7
          %s1586 = smul.addr %s1585, 8
          %s1587 = scalar_lea.vmem %s3, %s1586
        $region85: #{_lambda_.1} parent=80 // pred_fallthru
          _
      $region81: #{_lambda_.1} parent=5 // pred_fallthru
        _
    $region6: #{_lambda_.1} parent=1 // loop_footer
      %s13 = sadd.s32 1, %s9
    $region7: #{_lambda_.1} parent=1 // loop_footer_branch
      %8 = sbr.rel target = $region3
    $region8: #{_lambda_.1} parent=1 // loop_exit
      _

</llo_original>
